<compile_context>
chip_gen: v6e
topology: v6e:2x2x1
jax: 0.10.0
libtpu: 0.0.40
codegen_flags: <defaults>
</compile_context>

<pallas_src>
import numpy as np
import jax
import jax.numpy as jnp
from jax import lax
from jax.experimental import pallas as pl
from jax.experimental.pallas import tpu as pltpu

NUM_SPECIAL = 4
LANE = 128            # lane width
SUBLANE_BF16 = 16     # one bf16 vreg holds [16, 128]


# ----------------------------- Pallas kernel --------------------------------
def gru_encoder_kernel(emb_ref, len_ref, h0_ref,
                       wi_ref, wh_ref, bi_ref, bhn_ref,
                       wlin_ref, blin_ref,
                       out_ref, gx_ref, h_ref):
    # emb_ref : (Tc, Bt, Ep) bf16       len_ref : (Bt, 1) int32
    # h0_ref  : (Bt, Hp)     f32        wi_ref  : (Ep, 3Hp) bf16
    # wh_ref  : (Hp, 3Hp)    bf16       bi_ref  : (1, 3Hp) f32 (b_i + b_h for r,z)
    # bhn_ref : (1, Hp)      f32        wlin_ref: (Hp, Cp) bf16, blin_ref: (1, Cp) f32
    # out_ref : (Bt, Cp)     f32
    # gx_ref  : (Tc, Bt, 3Hp) bf16 scratch   h_ref: (Bt, Hp) f32 scratch (carried)
    Tc, Bt, Ep = emb_ref.shape
    Hp = bhn_ref.shape[1]
    tc = pl.program_id(1)
    n_tc = pl.num_programs(1)

    # --- initialize carried hidden state at the first T-chunk of each batch tile
    @pl.when(tc == 0)
    def _():
        h_ref[...] = h0_ref[...]

    # --- hoisted input-side gates for this chunk: one (Tc*Bt, Ep)@(Ep, 3Hp) matmul
    x_all = emb_ref[...].reshape(Tc * Bt, Ep)                        # bf16
    gx = jnp.dot(x_all, wi_ref[...], preferred_element_type=jnp.float32)
    gx = gx + bi_ref[...]                                            # fused biases
    gx_ref[...] = gx.reshape(Tc, Bt, 3 * Hp).astype(jnp.bfloat16)    # bf16 scratch

    # --- hoisted loop invariants
    wh = wh_ref[...]                                                 # (Hp, 3Hp) bf16
    b_hn = jnp.broadcast_to(bhn_ref[...], (Bt, Hp))                  # hoisted broadcast
    lens = len_ref[...]                                              # (Bt, 1) int32
    t0 = tc * Tc                                                     # global chunk offset

    def step(t, h):
        gx_t = gx_ref[t].astype(jnp.float32)                         # (Bt, 3Hp)
        gh = jnp.dot(h.astype(jnp.bfloat16), wh,
                     preferred_element_type=jnp.float32)             # (Bt, 3Hp)
        # fused r/z sigmoid over the contiguous first 2*Hp lanes
        rz = jax.nn.sigmoid(gx_t[:, :2 * Hp] + gh[:, :2 * Hp])
        r = rz[:, :Hp]
        z = rz[:, Hp:]
        n = jnp.tanh(gx_t[:, 2 * Hp:] + r * (gh[:, 2 * Hp:] + b_hn))
        h_new = n + z * (h - n)                                      # == (1-z)*n + z*h
        # packed-sequence semantics: freeze hidden once t >= length
        return jnp.where(t0 + t < lens, h_new, h)

    unroll = True if Tc <= 32 else 8                                 # capped unroll
    h_final = lax.fori_loop(0, Tc, step, h_ref[...], unroll=unroll)
    h_ref[...] = h_final

    # --- output projection only after the last chunk
    @pl.when(tc == n_tc - 1)
    def _():
        out_ref[...] = (jnp.dot(h_final.astype(jnp.bfloat16), wlin_ref[...],
                                preferred_element_type=jnp.float32)
                        + blin_ref[...])


# ------------------------------ helpers --------------------------------------
def word_ids(ids):
    return (ids - NUM_SPECIAL + 1) * (ids >= NUM_SPECIAL).astype(ids.dtype)


def special_ids(ids):
    return ids * (ids < NUM_SPECIAL).astype(ids.dtype)


def _round_up(x, m):
    return ((x + m - 1) // m) * m


def _pad_to(x, shape):
    return jnp.pad(x, [(0, s - d) for d, s in zip(x.shape, shape)])


def _tpu_info():
    try:
        return pltpu.get_tpu_info()
    except Exception:
        return None


def _vmem_limit_bytes():
    """~80% of physical VMEM (v5e/v6e ~102 MiB, v7x ~51 MiB); safe 32 MiB fallback."""
    info = _tpu_info()
    if info is not None:
        try:
            cap = int(getattr(info, "vmem_capacity_bytes"))
            if cap > 0:
                return min(int(cap * 0.8), 112 * 1024 * 1024)
        except Exception:
            pass
    return 32 * 1024 * 1024


def _num_tensorcores_per_chip():
    """Best-effort TC-per-chip detection (v7x=2); defaults to 1."""
    info = _tpu_info()
    if info is not None:
        for name in ("num_cores", "core_count", "tensorcore_count",
                     "num_tensorcores", "cores_per_chip"):
            try:
                v = int(getattr(info, name))
                if v >= 1:
                    return v
            except Exception:
                pass
    return 1


def _choose_t_chunk(T, b_tile, Ep, Hp, budget_bytes):
    """Largest T-chunk (<= min(T,128)) whose emb block + gx scratch fit the budget."""
    tc = min(T, 128)

    def bytes_for(n):
        emb = 2 * n * b_tile * Ep * 2            # double-buffered bf16 emb block
        gx = n * b_tile * 3 * Hp * 2             # bf16 gates_x scratch
        gx_tmp = n * b_tile * 3 * Hp * 4         # f32 matmul result before cast
        return emb + gx + gx_tmp

    while tc > 1 and bytes_for(tc) > budget_bytes:
        tc = (tc + 1) // 2
    return max(tc, 1)


# ------------------------------ JAX wrapper ----------------------------------
def rnn_encoder_forward(enc_input, lengths, word_embeddings, special_embeddings,
                        params, hidden):
    """enc_input: (B, T) int32, lengths: python list of ints,
    word_embeddings: (V, E) table, hidden: (1, B, H). Returns (B, C)."""
    B, T = enc_input.shape
    E = word_embeddings.shape[1]
    H = params["w_hr"].shape[0]
    C = params["w_lin"].shape[1]

    Ep = _round_up(E, LANE)
    Hp = _round_up(H, LANE)
    Cp = _round_up(C, LANE)

    # --- batch tiling: fat tiles, >=16 rows; 1 grid step on 1-TC chips,
    #     2 steps (one per TensorCore) on dual-TC chips when the batch allows.
    Bp = _round_up(max(B, 1), SUBLANE_BF16)
    if Bp <= 512:
        n_b_tiles = 2 if (_num_tensorcores_per_chip() >= 2
                          and Bp >= 2 * SUBLANE_BF16) else 1
    else:
        n_b_tiles = pl.cdiv(Bp, 256)
    Bp = _round_up(Bp, SUBLANE_BF16 * n_b_tiles)
    b_tile = Bp // n_b_tiles

    # --- VMEM budget -> T-chunk size ---
    vmem_limit = _vmem_limit_bytes()
    fixed = 2 * 2 * (Ep * 3 * Hp + Hp * 3 * Hp + Hp * Cp)     # bf16 weights, 2 bufs
    fixed += 2 * 4 * (3 * Hp + Hp + Cp)                       # f32 biases, 2 bufs
    fixed += 4 * b_tile * (2 * Cp + 2 * Hp + Hp + 2)          # out, h0, h scratch, lens
    budget = max(int(0.6 * vmem_limit) - fixed, 1)
    t_chunk = _choose_t_chunk(T, b_tile, Ep, Hp, budget)
    Tp = _round_up(T, t_chunk)
    n_t_chunks = Tp // t_chunk

    # --- host-side sort/unsort bookkeeping (as in PyTorch forward) ---
    lengths = [int(l) for l in lengths]
    true2sorted = sorted(range(len(lengths)), key=lambda x: -lengths[x])
    sorted2true = sorted(range(len(lengths)), key=lambda x: true2sorted[x])
    # PyTorch quirk: initial `hidden` is NOT reordered along with the sort, so
    # original sequence i effectively starts from hidden[:, sorted2true[i], :].
    h0 = hidden[0][jnp.array(sorted2true, dtype=jnp.int32), :]          # (B, H)

    # --- embedding sum, time-major, cast to bf16 BEFORE padding ---
    ids_t = enc_input.astype(jnp.int32).T                               # (T, B)
    emb = (word_embeddings[word_ids(ids_t)]
           + special_embeddings[special_ids(ids_t)]).astype(jnp.bfloat16)
    emb = _pad_to(emb, (Tp, Bp, Ep))                                    # (Tp, Bp, Ep)

    # --- fused + padded parameters (matmul operands in bf16, biases f32) ---
    wi = jnp.concatenate([_pad_to(params["w_ir"], (Ep, Hp)),
                          _pad_to(params["w_iz"], (Ep, Hp)),
                          _pad_to(params["w_in"], (Ep, Hp))],
                         axis=1).astype(jnp.bfloat16)                   # (Ep, 3Hp)
    wh = jnp.concatenate([_pad_to(params["w_hr"], (Hp, Hp)),
                          _pad_to(params["w_hz"], (Hp, Hp)),
                          _pad_to(params["w_hn"], (Hp, Hp))],
                         axis=1).astype(jnp.bfloat16)                   # (Hp, 3Hp)
    bi = jnp.concatenate([_pad_to(params["b_ir"] + params["b_hr"], (1, Hp)),
                          _pad_to(params["b_iz"] + params["b_hz"], (1, Hp)),
                          _pad_to(params["b_in"], (1, Hp))], axis=1)    # (1, 3Hp) f32
    bhn = _pad_to(params["b_hn"], (1, Hp))                              # (1, Hp) f32
    wlin = _pad_to(params["w_lin"], (Hp, Cp)).astype(jnp.bfloat16)      # (Hp, Cp)
    blin = _pad_to(params["b_lin"], (1, Cp))                            # (1, Cp) f32

    h0p = _pad_to(h0.astype(jnp.float32), (Bp, Hp))                     # (Bp, Hp)
    len_arr = jnp.zeros((Bp, 1), jnp.int32).at[:B, 0].set(
        jnp.array(lengths, dtype=jnp.int32))

    grid = (n_b_tiles, n_t_chunks)
    out = pl.pallas_call(
        gru_encoder_kernel,
        out_shape=jax.ShapeDtypeStruct((Bp, Cp), jnp.float32),
        grid_spec=pltpu.PrefetchScalarGridSpec(
            num_scalar_prefetch=0,
            grid=grid,
            in_specs=[
                pl.BlockSpec((t_chunk, b_tile, Ep), lambda i, t: (t, i, 0)),  # emb
                pl.BlockSpec((b_tile, 1), lambda i, t: (i, 0)),               # lengths
                pl.BlockSpec((b_tile, Hp), lambda i, t: (i, 0)),              # h0
                pl.BlockSpec((Ep, 3 * Hp), lambda i, t: (0, 0)),              # W_i fused
                pl.BlockSpec((Hp, 3 * Hp), lambda i, t: (0, 0)),              # W_h fused
                pl.BlockSpec((1, 3 * Hp), lambda i, t: (0, 0)),               # b_i fused
                pl.BlockSpec((1, Hp), lambda i, t: (0, 0)),                   # b_hn
                pl.BlockSpec((Hp, Cp), lambda i, t: (0, 0)),                  # W_lin
                pl.BlockSpec((1, Cp), lambda i, t: (0, 0)),                   # b_lin
            ],
            out_specs=pl.BlockSpec((b_tile, Cp), lambda i, t: (i, 0)),
            scratch_shapes=[
                pltpu.VMEM((t_chunk, b_tile, 3 * Hp), jnp.bfloat16),  # gates_x chunk
                pltpu.VMEM((b_tile, Hp), jnp.float32),                # carried hidden
            ],
        ),
        compiler_params=pltpu.CompilerParams(
            # batch tiles -> parallel (v7x 2 TCs); T-chunks carry state -> arbitrary
            dimension_semantics=("parallel", "arbitrary"),
            vmem_limit_bytes=vmem_limit,
        ),
    )(emb, len_arr, h0p, wi, wh, bi, bhn, wlin, blin)

    return out[:B, :C]


# --------------------------- pure-JAX reference -------------------------------
def reference_forward(enc_input, lengths, word_embeddings, special_embeddings,
                      params, hidden):
    """Faithful f32 emulation of the PyTorch forward (sort -> packed GRU -> unsort)."""
    B, T = enc_input.shape
    lengths = [int(l) for l in lengths]
    true2sorted = sorted(range(B), key=lambda x: -lengths[x])
    sorted2true = sorted(range(B), key=lambda x: true2sorted[x])

    ids_s = jnp.asarray(enc_input)[jnp.array(true2sorted)]            # (B, T) sorted
    lens_s = np.array([lengths[i] for i in true2sorted])

    emb = (word_embeddings[word_ids(ids_s.astype(jnp.int32))]
           + special_embeddings[special_ids(ids_s.astype(jnp.int32))])
    emb = jnp.transpose(emb, (1, 0, 2)).astype(jnp.float32)           # (T, B, E)

    h = hidden[0]                                                     # quirk: unsorted
    for t in range(T):
        x = emb[t]
        r = jax.nn.sigmoid(x @ params["w_ir"] + params["b_ir"]
                           + h @ params["w_hr"] + params["b_hr"])
        z = jax.nn.sigmoid(x @ params["w_iz"] + params["b_iz"]
                           + h @ params["w_hz"] + params["b_hz"])
        n = jnp.tanh(x @ params["w_in"] + params["b_in"]
                     + r * (h @ params["w_hn"] + params["b_hn"]))
        h_new = (1.0 - z) * n + z * h
        mask = jnp.asarray(lens_s[:, None] > t, dtype=jnp.float32)
        h = mask * h_new + (1.0 - mask) * h

    h = h[jnp.array(sorted2true)]                                     # unsort
    return h @ params["w_lin"] + params["b_lin"]


# ---------------------------------- main --------------------------------------
if __name__ == "__main__":
    B, T, E, H, C = 4, 8, 32, 32, 5       # batch, seq, embedding, hidden, classes
    V = 16                                # word-embedding vocab rows

    key = jax.random.PRNGKey(0)
    ks = jax.random.split(key, 20)
    scale = 1.0 / np.sqrt(H)

    u = lambda k, shape: jax.random.uniform(k, shape, jnp.float32, -scale, scale)
    params = {
        "w_ir": u(ks[0], (E, H)), "w_iz": u(ks[1], (E, H)), "w_in": u(ks[2], (E, H)),
        "w_hr": u(ks[3], (H, H)), "w_hz": u(ks[4], (H, H)), "w_hn": u(ks[5], (H, H)),
        "b_ir": u(ks[6], (1, H)), "b_iz": u(ks[7], (1, H)), "b_in": u(ks[8], (1, H)),
        "b_hr": u(ks[9], (1, H)), "b_hz": u(ks[10], (1, H)), "b_hn": u(ks[11], (1, H)),
        "w_lin": u(ks[12], (H, C)), "b_lin": u(ks[13], (1, C)),
    }
    word_embeddings = jax.random.normal(ks[14], (V, E), jnp.float32) * 0.1
    special_embeddings = jax.random.normal(ks[15], (NUM_SPECIAL + 1, E),
                                           jnp.float32) * 0.1
    special_embeddings = special_embeddings.at[0].set(0.0)   # padding_idx=0

    enc_input = jax.random.randint(ks[16], (B, T), 0, V, dtype=jnp.int32)
    lengths = [8, 3, 6, 5]                                   # per-batch valid lengths
    hidden = jax.random.normal(ks[17], (1, B, H), jnp.float32) * 0.1

    out = rnn_encoder_forward(enc_input, lengths, word_embeddings,
                              special_embeddings, params, hidden)
    out = jax.block_until_ready(out)

    ref = jax.block_until_ready(
        reference_forward(enc_input, lengths, word_embeddings,
                          special_embeddings, params, hidden))

    # bf16 MXU operands + bf16 gates_x scratch (f32 accumulation / gate math)
    # -> slightly looser tolerance than a pure-f32 run.
    np.testing.assert_allclose(np.asarray(out), np.asarray(ref),
                               rtol=2e-2, atol=2e-2)
    print("KERNEL_OK")
</pallas_src>

<mosaic_0001>
module attributes {stable_mosaic.version = 11 : i64} {
  func.func @gru_encoder_kernel(%arg0: i32, %arg1: i32, %arg2: memref<8x16x128xbf16, #tpu.memory_space<vmem>>, %arg3: memref<16x1xi32, #tpu.memory_space<vmem>>, %arg4: memref<16x128xf32, #tpu.memory_space<vmem>>, %arg5: memref<128x384xbf16, #tpu.memory_space<vmem>>, %arg6: memref<128x384xbf16, #tpu.memory_space<vmem>>, %arg7: memref<1x384xf32, #tpu.memory_space<vmem>>, %arg8: memref<1x128xf32, #tpu.memory_space<vmem>>, %arg9: memref<128x128xbf16, #tpu.memory_space<vmem>>, %arg10: memref<1x128xf32, #tpu.memory_space<vmem>>, %arg11: memref<16x128xf32, #tpu.memory_space<vmem>>, %arg12: memref<8x16x384xbf16, #tpu.memory_space<vmem>>, %arg13: memref<16x128xf32, #tpu.memory_space<vmem>>) attributes {dimension_semantics = [#tpu.dimension_semantics<parallel>, #tpu.dimension_semantics<arbitrary>], iteration_bounds = array<i64: 1, 1>, scalar_prefetch = 0 : i64, scratch_operands = 2 : i64, tpu.core_type = #tpu.core_type<tc>, window_params = [{transform_indices = @transform_0, window_bounds = array<i64: 8, 16, 128>}, {transform_indices = @transform_1, window_bounds = array<i64: 16, 1>}, {transform_indices = @transform_2, window_bounds = array<i64: 16, 128>}, {pipeline_mode = #tpu.pipeline_mode<synchronous>, transform_indices = @transform_3, window_bounds = array<i64: 128, 384>}, {pipeline_mode = #tpu.pipeline_mode<synchronous>, transform_indices = @transform_4, window_bounds = array<i64: 128, 384>}, {pipeline_mode = #tpu.pipeline_mode<synchronous>, transform_indices = @transform_5, window_bounds = array<i64: 1, 384>}, {pipeline_mode = #tpu.pipeline_mode<synchronous>, transform_indices = @transform_6, window_bounds = array<i64: 1, 128>}, {pipeline_mode = #tpu.pipeline_mode<synchronous>, transform_indices = @transform_7, window_bounds = array<i64: 128, 128>}, {pipeline_mode = #tpu.pipeline_mode<synchronous>, transform_indices = @transform_8, window_bounds = array<i64: 1, 128>}, {transform_indices = @transform_9, window_bounds = array<i64: 16, 128>}]} {
    %c0_i32 = arith.constant 0 : i32
    %0 = arith.cmpi eq, %arg1, %c0_i32 : i32
    %1 = arith.extui %0 : i1 to i32
    %c0_i32_0 = arith.constant 0 : i32
    %2 = arith.cmpi ne, %1, %c0_i32_0 : i32
    scf.if %2 {
      %c0_56 = arith.constant 0 : index
      %c0_57 = arith.constant 0 : index
      %272 = vector.load %arg4[%c0_56, %c0_57] : memref<16x128xf32, #tpu.memory_space<vmem>>, vector<16x128xf32>
      %c0_58 = arith.constant 0 : index
      %c0_59 = arith.constant 0 : index
      %273 = vector.load %arg13[%c0_58, %c0_59] : memref<16x128xf32, #tpu.memory_space<vmem>>, vector<16x128xf32>
      tpu.vector_store %arg13[%c0_58, %c0_59], %272 {strides = array<i32>} : memref<16x128xf32, #tpu.memory_space<vmem>>, vector<16x128xf32>,
    } else {
    }
    %c0 = arith.constant 0 : index
    %c0_1 = arith.constant 0 : index
    %c0_2 = arith.constant 0 : index
    %3 = vector.load %arg2[%c0, %c0_1, %c0_2] : memref<8x16x128xbf16, #tpu.memory_space<vmem>>, vector<8x16x128xbf16>
    %4 = vector.shape_cast %3 : vector<8x16x128xbf16> to vector<128x128xbf16>
    %c0_3 = arith.constant 0 : index
    %c0_4 = arith.constant 0 : index
    %5 = vector.load %arg5[%c0_3, %c0_4] : memref<128x384xbf16, #tpu.memory_space<vmem>>, vector<128x384xbf16>
    %cst = arith.constant dense<0.000000e+00> : vector<128x384xf32>
    %6 = tpu.matmul %4, %5, %cst {dimension_numbers = #tpu.dot_dimension_numbers<[1], [0], [0], [1], [0, 0, 1, 1], [], []>} : vector<128x128xbf16>, vector<128x384xbf16>, vector<128x384xf32> -> vector<128x384xf32>
    %c0_5 = arith.constant 0 : index
    %c0_6 = arith.constant 0 : index
    %7 = vector.load %arg7[%c0_5, %c0_6] : memref<1x384xf32, #tpu.memory_space<vmem>>, vector<1x384xf32>
    %8 = vector.broadcast %7 : vector<1x384xf32> to vector<128x384xf32>
    %9 = arith.addf %6, %8 : vector<128x384xf32>
    %10 = vector.shape_cast %9 : vector<128x384xf32> to vector<8x16x384xf32>
    %11 = arith.truncf %10 : vector<8x16x384xf32> to vector<8x16x384xbf16>
    %c0_7 = arith.constant 0 : index
    %c0_8 = arith.constant 0 : index
    %c0_9 = arith.constant 0 : index
    %12 = vector.load %arg12[%c0_7, %c0_8, %c0_9] : memref<8x16x384xbf16, #tpu.memory_space<vmem>>, vector<8x16x384xbf16>
    tpu.vector_store %arg12[%c0_7, %c0_8, %c0_9], %11 {strides = array<i32>} : memref<8x16x384xbf16, #tpu.memory_space<vmem>>, vector<8x16x384xbf16>,
    %c0_10 = arith.constant 0 : index
    %c0_11 = arith.constant 0 : index
    %13 = vector.load %arg6[%c0_10, %c0_11] : memref<128x384xbf16, #tpu.memory_space<vmem>>, vector<128x384xbf16>
    %c0_12 = arith.constant 0 : index
    %c0_13 = arith.constant 0 : index
    %14 = vector.load %arg8[%c0_12, %c0_13] : memref<1x128xf32, #tpu.memory_space<vmem>>, vector<1x128xf32>
    %15 = vector.shape_cast %14 : vector<1x128xf32> to vector<1x128xf32>
    %16 = vector.broadcast %15 : vector<1x128xf32> to vector<16x128xf32>
    %c0_14 = arith.constant 0 : index
    %c0_15 = arith.constant 0 : index
    %17 = vector.load %arg3[%c0_14, %c0_15] : memref<16x1xi32, #tpu.memory_space<vmem>>, vector<16x1xi32>
    %c8_i32 = arith.constant 8 : i32
    %18 = arith.muli %arg1, %c8_i32 : i32
    %c0_16 = arith.constant 0 : index
    %c0_17 = arith.constant 0 : index
    %19 = vector.load %arg13[%c0_16, %c0_17] : memref<16x128xf32, #tpu.memory_space<vmem>>, vector<16x128xf32>
    %c0_i32_18 = arith.constant 0 : i32
    %20 = arith.index_cast %c0_i32_18 : i32 to index
    %c0_19 = arith.constant 0 : index
    %c0_20 = arith.constant 0 : index
    %21 = vector.load %arg12[%20, %c0_19, %c0_20] : memref<8x16x384xbf16, #tpu.memory_space<vmem>>, vector<1x16x384xbf16>
    %22 = vector.shape_cast %21 : vector<1x16x384xbf16> to vector<16x384xbf16>
    %23 = arith.extf %22 : vector<16x384xbf16> to vector<16x384xf32>
    %24 = arith.truncf %19 : vector<16x128xf32> to vector<16x128xbf16>
    %cst_21 = arith.constant dense<0.000000e+00> : vector<16x384xf32>
    %25 = tpu.matmul %24, %13, %cst_21 {dimension_numbers = #tpu.dot_dimension_numbers<[1], [0], [0], [1], [0, 0, 1, 1], [], []>} : vector<16x128xbf16>, vector<128x384xbf16>, vector<16x384xf32> -> vector<16x384xf32>
    %26 = vector.extract_strided_slice %23 {offsets = [0, 0], sizes = [16, 256], strides = [1, 1]} : vector<16x384xf32> to vector<16x256xf32>
    %27 = vector.extract_strided_slice %25 {offsets = [0, 0], sizes = [16, 256], strides = [1, 1]} : vector<16x384xf32> to vector<16x256xf32>
    %28 = arith.addf %26, %27 : vector<16x256xf32>
    %29 = arith.negf %28 : vector<16x256xf32>
    %30 = math.exp %29 : vector<16x256xf32>
    %cst_22 = arith.constant 1.000000e+00 : f32
    %31 = vector.broadcast %cst_22 : f32 to vector<16x256xf32>
    %32 = arith.addf %31, %30 : vector<16x256xf32>
    %33 = arith.divf %31, %32 : vector<16x256xf32>
    %34 = vector.extract_strided_slice %33 {offsets = [0, 0], sizes = [16, 128], strides = [1, 1]} : vector<16x256xf32> to vector<16x128xf32>
    %35 = vector.extract_strided_slice %33 {offsets = [0, 128], sizes = [16, 128], strides = [1, 1]} : vector<16x256xf32> to vector<16x128xf32>
    %36 = vector.extract_strided_slice %23 {offsets = [0, 256], sizes = [16, 128], strides = [1, 1]} : vector<16x384xf32> to vector<16x128xf32>
    %37 = vector.extract_strided_slice %25 {offsets = [0, 256], sizes = [16, 128], strides = [1, 1]} : vector<16x384xf32> to vector<16x128xf32>
    %38 = arith.addf %37, %16 : vector<16x128xf32>
    %39 = arith.mulf %34, %38 : vector<16x128xf32>
    %40 = arith.addf %36, %39 : vector<16x128xf32>
    %41 = math.tanh %40 : vector<16x128xf32>
    %42 = arith.subf %19, %41 : vector<16x128xf32>
    %43 = arith.mulf %35, %42 : vector<16x128xf32>
    %44 = arith.addf %41, %43 : vector<16x128xf32>
    %45 = arith.addi %18, %c0_i32_18 : i32
    %46 = vector.broadcast %45 : i32 to vector<16x1xi32>
    %47 = arith.cmpi slt, %46, %17 : vector<16x1xi32>
    %48 = vector.shape_cast %47 : vector<16x1xi1> to vector<16x1xi1>
    %49 = vector.broadcast %48 : vector<16x1xi1> to vector<16x128xi1>
    %50 = arith.select %49, %44, %19 : vector<16x128xi1>, vector<16x128xf32>
    %c1_i32 = arith.constant 1 : i32
    %51 = arith.index_cast %c1_i32 : i32 to index
    %c0_23 = arith.constant 0 : index
    %c0_24 = arith.constant 0 : index
    %52 = vector.load %arg12[%51, %c0_23, %c0_24] : memref<8x16x384xbf16, #tpu.memory_space<vmem>>, vector<1x16x384xbf16>
    %53 = vector.shape_cast %52 : vector<1x16x384xbf16> to vector<16x384xbf16>
    %54 = arith.extf %53 : vector<16x384xbf16> to vector<16x384xf32>
    %55 = arith.truncf %50 : vector<16x128xf32> to vector<16x128xbf16>
    %cst_25 = arith.constant dense<0.000000e+00> : vector<16x384xf32>
    %56 = tpu.matmul %55, %13, %cst_25 {dimension_numbers = #tpu.dot_dimension_numbers<[1], [0], [0], [1], [0, 0, 1, 1], [], []>} : vector<16x128xbf16>, vector<128x384xbf16>, vector<16x384xf32> -> vector<16x384xf32>
    %57 = vector.extract_strided_slice %54 {offsets = [0, 0], sizes = [16, 256], strides = [1, 1]} : vector<16x384xf32> to vector<16x256xf32>
    %58 = vector.extract_strided_slice %56 {offsets = [0, 0], sizes = [16, 256], strides = [1, 1]} : vector<16x384xf32> to vector<16x256xf32>
    %59 = arith.addf %57, %58 : vector<16x256xf32>
    %60 = arith.negf %59 : vector<16x256xf32>
    %61 = math.exp %60 : vector<16x256xf32>
    %cst_26 = arith.constant 1.000000e+00 : f32
    %62 = vector.broadcast %cst_26 : f32 to vector<16x256xf32>
    %63 = arith.addf %62, %61 : vector<16x256xf32>
    %64 = arith.divf %62, %63 : vector<16x256xf32>
    %65 = vector.extract_strided_slice %64 {offsets = [0, 0], sizes = [16, 128], strides = [1, 1]} : vector<16x256xf32> to vector<16x128xf32>
    %66 = vector.extract_strided_slice %64 {offsets = [0, 128], sizes = [16, 128], strides = [1, 1]} : vector<16x256xf32> to vector<16x128xf32>
    %67 = vector.extract_strided_slice %54 {offsets = [0, 256], sizes = [16, 128], strides = [1, 1]} : vector<16x384xf32> to vector<16x128xf32>
    %68 = vector.extract_strided_slice %56 {offsets = [0, 256], sizes = [16, 128], strides = [1, 1]} : vector<16x384xf32> to vector<16x128xf32>
    %69 = arith.addf %68, %16 : vector<16x128xf32>
    %70 = arith.mulf %65, %69 : vector<16x128xf32>
    %71 = arith.addf %67, %70 : vector<16x128xf32>
    %72 = math.tanh %71 : vector<16x128xf32>
    %73 = arith.subf %50, %72 : vector<16x128xf32>
    %74 = arith.mulf %66, %73 : vector<16x128xf32>
    %75 = arith.addf %72, %74 : vector<16x128xf32>
    %76 = arith.addi %18, %c1_i32 : i32
    %77 = vector.broadcast %76 : i32 to vector<16x1xi32>
    %78 = arith.cmpi slt, %77, %17 : vector<16x1xi32>
    %79 = vector.shape_cast %78 : vector<16x1xi1> to vector<16x1xi1>
    %80 = vector.broadcast %79 : vector<16x1xi1> to vector<16x128xi1>
    %81 = arith.select %80, %75, %50 : vector<16x128xi1>, vector<16x128xf32>
    %c2_i32 = arith.constant 2 : i32
    %82 = arith.index_cast %c2_i32 : i32 to index
    %c0_27 = arith.constant 0 : index
    %c0_28 = arith.constant 0 : index
    %83 = vector.load %arg12[%82, %c0_27, %c0_28] : memref<8x16x384xbf16, #tpu.memory_space<vmem>>, vector<1x16x384xbf16>
    %84 = vector.shape_cast %83 : vector<1x16x384xbf16> to vector<16x384xbf16>
    %85 = arith.extf %84 : vector<16x384xbf16> to vector<16x384xf32>
    %86 = arith.truncf %81 : vector<16x128xf32> to vector<16x128xbf16>
    %cst_29 = arith.constant dense<0.000000e+00> : vector<16x384xf32>
    %87 = tpu.matmul %86, %13, %cst_29 {dimension_numbers = #tpu.dot_dimension_numbers<[1], [0], [0], [1], [0, 0, 1, 1], [], []>} : vector<16x128xbf16>, vector<128x384xbf16>, vector<16x384xf32> -> vector<16x384xf32>
    %88 = vector.extract_strided_slice %85 {offsets = [0, 0], sizes = [16, 256], strides = [1, 1]} : vector<16x384xf32> to vector<16x256xf32>
    %89 = vector.extract_strided_slice %87 {offsets = [0, 0], sizes = [16, 256], strides = [1, 1]} : vector<16x384xf32> to vector<16x256xf32>
    %90 = arith.addf %88, %89 : vector<16x256xf32>
    %91 = arith.negf %90 : vector<16x256xf32>
    %92 = math.exp %91 : vector<16x256xf32>
    %cst_30 = arith.constant 1.000000e+00 : f32
    %93 = vector.broadcast %cst_30 : f32 to vector<16x256xf32>
    %94 = arith.addf %93, %92 : vector<16x256xf32>
    %95 = arith.divf %93, %94 : vector<16x256xf32>
    %96 = vector.extract_strided_slice %95 {offsets = [0, 0], sizes = [16, 128], strides = [1, 1]} : vector<16x256xf32> to vector<16x128xf32>
    %97 = vector.extract_strided_slice %95 {offsets = [0, 128], sizes = [16, 128], strides = [1, 1]} : vector<16x256xf32> to vector<16x128xf32>
    %98 = vector.extract_strided_slice %85 {offsets = [0, 256], sizes = [16, 128], strides = [1, 1]} : vector<16x384xf32> to vector<16x128xf32>
    %99 = vector.extract_strided_slice %87 {offsets = [0, 256], sizes = [16, 128], strides = [1, 1]} : vector<16x384xf32> to vector<16x128xf32>
    %100 = arith.addf %99, %16 : vector<16x128xf32>
    %101 = arith.mulf %96, %100 : vector<16x128xf32>
    %102 = arith.addf %98, %101 : vector<16x128xf32>
    %103 = math.tanh %102 : vector<16x128xf32>
    %104 = arith.subf %81, %103 : vector<16x128xf32>
    %105 = arith.mulf %97, %104 : vector<16x128xf32>
    %106 = arith.addf %103, %105 : vector<16x128xf32>
    %107 = arith.addi %18, %c2_i32 : i32
    %108 = vector.broadcast %107 : i32 to vector<16x1xi32>
    %109 = arith.cmpi slt, %108, %17 : vector<16x1xi32>
    %110 = vector.shape_cast %109 : vector<16x1xi1> to vector<16x1xi1>
    %111 = vector.broadcast %110 : vector<16x1xi1> to vector<16x128xi1>
    %112 = arith.select %111, %106, %81 : vector<16x128xi1>, vector<16x128xf32>
    %c3_i32 = arith.constant 3 : i32
    %113 = arith.index_cast %c3_i32 : i32 to index
    %c0_31 = arith.constant 0 : index
    %c0_32 = arith.constant 0 : index
    %114 = vector.load %arg12[%113, %c0_31, %c0_32] : memref<8x16x384xbf16, #tpu.memory_space<vmem>>, vector<1x16x384xbf16>
    %115 = vector.shape_cast %114 : vector<1x16x384xbf16> to vector<16x384xbf16>
    %116 = arith.extf %115 : vector<16x384xbf16> to vector<16x384xf32>
    %117 = arith.truncf %112 : vector<16x128xf32> to vector<16x128xbf16>
    %cst_33 = arith.constant dense<0.000000e+00> : vector<16x384xf32>
    %118 = tpu.matmul %117, %13, %cst_33 {dimension_numbers = #tpu.dot_dimension_numbers<[1], [0], [0], [1], [0, 0, 1, 1], [], []>} : vector<16x128xbf16>, vector<128x384xbf16>, vector<16x384xf32> -> vector<16x384xf32>
    %119 = vector.extract_strided_slice %116 {offsets = [0, 0], sizes = [16, 256], strides = [1, 1]} : vector<16x384xf32> to vector<16x256xf32>
    %120 = vector.extract_strided_slice %118 {offsets = [0, 0], sizes = [16, 256], strides = [1, 1]} : vector<16x384xf32> to vector<16x256xf32>
    %121 = arith.addf %119, %120 : vector<16x256xf32>
    %122 = arith.negf %121 : vector<16x256xf32>
    %123 = math.exp %122 : vector<16x256xf32>
    %cst_34 = arith.constant 1.000000e+00 : f32
    %124 = vector.broadcast %cst_34 : f32 to vector<16x256xf32>
    %125 = arith.addf %124, %123 : vector<16x256xf32>
    %126 = arith.divf %124, %125 : vector<16x256xf32>
    %127 = vector.extract_strided_slice %126 {offsets = [0, 0], sizes = [16, 128], strides = [1, 1]} : vector<16x256xf32> to vector<16x128xf32>
    %128 = vector.extract_strided_slice %126 {offsets = [0, 128], sizes = [16, 128], strides = [1, 1]} : vector<16x256xf32> to vector<16x128xf32>
    %129 = vector.extract_strided_slice %116 {offsets = [0, 256], sizes = [16, 128], strides = [1, 1]} : vector<16x384xf32> to vector<16x128xf32>
    %130 = vector.extract_strided_slice %118 {offsets = [0, 256], sizes = [16, 128], strides = [1, 1]} : vector<16x384xf32> to vector<16x128xf32>
    %131 = arith.addf %130, %16 : vector<16x128xf32>
    %132 = arith.mulf %127, %131 : vector<16x128xf32>
    %133 = arith.addf %129, %132 : vector<16x128xf32>
    %134 = math.tanh %133 : vector<16x128xf32>
    %135 = arith.subf %112, %134 : vector<16x128xf32>
    %136 = arith.mulf %128, %135 : vector<16x128xf32>
    %137 = arith.addf %134, %136 : vector<16x128xf32>
    %138 = arith.addi %18, %c3_i32 : i32
    %139 = vector.broadcast %138 : i32 to vector<16x1xi32>
    %140 = arith.cmpi slt, %139, %17 : vector<16x1xi32>
    %141 = vector.shape_cast %140 : vector<16x1xi1> to vector<16x1xi1>
    %142 = vector.broadcast %141 : vector<16x1xi1> to vector<16x128xi1>
    %143 = arith.select %142, %137, %112 : vector<16x128xi1>, vector<16x128xf32>
    %c4_i32 = arith.constant 4 : i32
    %144 = arith.index_cast %c4_i32 : i32 to index
    %c0_35 = arith.constant 0 : index
    %c0_36 = arith.constant 0 : index
    %145 = vector.load %arg12[%144, %c0_35, %c0_36] : memref<8x16x384xbf16, #tpu.memory_space<vmem>>, vector<1x16x384xbf16>
    %146 = vector.shape_cast %145 : vector<1x16x384xbf16> to vector<16x384xbf16>
    %147 = arith.extf %146 : vector<16x384xbf16> to vector<16x384xf32>
    %148 = arith.truncf %143 : vector<16x128xf32> to vector<16x128xbf16>
    %cst_37 = arith.constant dense<0.000000e+00> : vector<16x384xf32>
    %149 = tpu.matmul %148, %13, %cst_37 {dimension_numbers = #tpu.dot_dimension_numbers<[1], [0], [0], [1], [0, 0, 1, 1], [], []>} : vector<16x128xbf16>, vector<128x384xbf16>, vector<16x384xf32> -> vector<16x384xf32>
    %150 = vector.extract_strided_slice %147 {offsets = [0, 0], sizes = [16, 256], strides = [1, 1]} : vector<16x384xf32> to vector<16x256xf32>
    %151 = vector.extract_strided_slice %149 {offsets = [0, 0], sizes = [16, 256], strides = [1, 1]} : vector<16x384xf32> to vector<16x256xf32>
    %152 = arith.addf %150, %151 : vector<16x256xf32>
    %153 = arith.negf %152 : vector<16x256xf32>
    %154 = math.exp %153 : vector<16x256xf32>
    %cst_38 = arith.constant 1.000000e+00 : f32
    %155 = vector.broadcast %cst_38 : f32 to vector<16x256xf32>
    %156 = arith.addf %155, %154 : vector<16x256xf32>
    %157 = arith.divf %155, %156 : vector<16x256xf32>
    %158 = vector.extract_strided_slice %157 {offsets = [0, 0], sizes = [16, 128], strides = [1, 1]} : vector<16x256xf32> to vector<16x128xf32>
    %159 = vector.extract_strided_slice %157 {offsets = [0, 128], sizes = [16, 128], strides = [1, 1]} : vector<16x256xf32> to vector<16x128xf32>
    %160 = vector.extract_strided_slice %147 {offsets = [0, 256], sizes = [16, 128], strides = [1, 1]} : vector<16x384xf32> to vector<16x128xf32>
    %161 = vector.extract_strided_slice %149 {offsets = [0, 256], sizes = [16, 128], strides = [1, 1]} : vector<16x384xf32> to vector<16x128xf32>
    %162 = arith.addf %161, %16 : vector<16x128xf32>
    %163 = arith.mulf %158, %162 : vector<16x128xf32>
    %164 = arith.addf %160, %163 : vector<16x128xf32>
    %165 = math.tanh %164 : vector<16x128xf32>
    %166 = arith.subf %143, %165 : vector<16x128xf32>
    %167 = arith.mulf %159, %166 : vector<16x128xf32>
    %168 = arith.addf %165, %167 : vector<16x128xf32>
    %169 = arith.addi %18, %c4_i32 : i32
    %170 = vector.broadcast %169 : i32 to vector<16x1xi32>
    %171 = arith.cmpi slt, %170, %17 : vector<16x1xi32>
    %172 = vector.shape_cast %171 : vector<16x1xi1> to vector<16x1xi1>
    %173 = vector.broadcast %172 : vector<16x1xi1> to vector<16x128xi1>
    %174 = arith.select %173, %168, %143 : vector<16x128xi1>, vector<16x128xf32>
    %c5_i32 = arith.constant 5 : i32
    %175 = arith.index_cast %c5_i32 : i32 to index
    %c0_39 = arith.constant 0 : index
    %c0_40 = arith.constant 0 : index
    %176 = vector.load %arg12[%175, %c0_39, %c0_40] : memref<8x16x384xbf16, #tpu.memory_space<vmem>>, vector<1x16x384xbf16>
    %177 = vector.shape_cast %176 : vector<1x16x384xbf16> to vector<16x384xbf16>
    %178 = arith.extf %177 : vector<16x384xbf16> to vector<16x384xf32>
    %179 = arith.truncf %174 : vector<16x128xf32> to vector<16x128xbf16>
    %cst_41 = arith.constant dense<0.000000e+00> : vector<16x384xf32>
    %180 = tpu.matmul %179, %13, %cst_41 {dimension_numbers = #tpu.dot_dimension_numbers<[1], [0], [0], [1], [0, 0, 1, 1], [], []>} : vector<16x128xbf16>, vector<128x384xbf16>, vector<16x384xf32> -> vector<16x384xf32>
    %181 = vector.extract_strided_slice %178 {offsets = [0, 0], sizes = [16, 256], strides = [1, 1]} : vector<16x384xf32> to vector<16x256xf32>
    %182 = vector.extract_strided_slice %180 {offsets = [0, 0], sizes = [16, 256], strides = [1, 1]} : vector<16x384xf32> to vector<16x256xf32>
    %183 = arith.addf %181, %182 : vector<16x256xf32>
    %184 = arith.negf %183 : vector<16x256xf32>
    %185 = math.exp %184 : vector<16x256xf32>
    %cst_42 = arith.constant 1.000000e+00 : f32
    %186 = vector.broadcast %cst_42 : f32 to vector<16x256xf32>
    %187 = arith.addf %186, %185 : vector<16x256xf32>
    %188 = arith.divf %186, %187 : vector<16x256xf32>
    %189 = vector.extract_strided_slice %188 {offsets = [0, 0], sizes = [16, 128], strides = [1, 1]} : vector<16x256xf32> to vector<16x128xf32>
    %190 = vector.extract_strided_slice %188 {offsets = [0, 128], sizes = [16, 128], strides = [1, 1]} : vector<16x256xf32> to vector<16x128xf32>
    %191 = vector.extract_strided_slice %178 {offsets = [0, 256], sizes = [16, 128], strides = [1, 1]} : vector<16x384xf32> to vector<16x128xf32>
    %192 = vector.extract_strided_slice %180 {offsets = [0, 256], sizes = [16, 128], strides = [1, 1]} : vector<16x384xf32> to vector<16x128xf32>
    %193 = arith.addf %192, %16 : vector<16x128xf32>
    %194 = arith.mulf %189, %193 : vector<16x128xf32>
    %195 = arith.addf %191, %194 : vector<16x128xf32>
    %196 = math.tanh %195 : vector<16x128xf32>
    %197 = arith.subf %174, %196 : vector<16x128xf32>
    %198 = arith.mulf %190, %197 : vector<16x128xf32>
    %199 = arith.addf %196, %198 : vector<16x128xf32>
    %200 = arith.addi %18, %c5_i32 : i32
    %201 = vector.broadcast %200 : i32 to vector<16x1xi32>
    %202 = arith.cmpi slt, %201, %17 : vector<16x1xi32>
    %203 = vector.shape_cast %202 : vector<16x1xi1> to vector<16x1xi1>
    %204 = vector.broadcast %203 : vector<16x1xi1> to vector<16x128xi1>
    %205 = arith.select %204, %199, %174 : vector<16x128xi1>, vector<16x128xf32>
    %c6_i32 = arith.constant 6 : i32
    %206 = arith.index_cast %c6_i32 : i32 to index
    %c0_43 = arith.constant 0 : index
    %c0_44 = arith.constant 0 : index
    %207 = vector.load %arg12[%206, %c0_43, %c0_44] : memref<8x16x384xbf16, #tpu.memory_space<vmem>>, vector<1x16x384xbf16>
    %208 = vector.shape_cast %207 : vector<1x16x384xbf16> to vector<16x384xbf16>
    %209 = arith.extf %208 : vector<16x384xbf16> to vector<16x384xf32>
    %210 = arith.truncf %205 : vector<16x128xf32> to vector<16x128xbf16>
    %cst_45 = arith.constant dense<0.000000e+00> : vector<16x384xf32>
    %211 = tpu.matmul %210, %13, %cst_45 {dimension_numbers = #tpu.dot_dimension_numbers<[1], [0], [0], [1], [0, 0, 1, 1], [], []>} : vector<16x128xbf16>, vector<128x384xbf16>, vector<16x384xf32> -> vector<16x384xf32>
    %212 = vector.extract_strided_slice %209 {offsets = [0, 0], sizes = [16, 256], strides = [1, 1]} : vector<16x384xf32> to vector<16x256xf32>
    %213 = vector.extract_strided_slice %211 {offsets = [0, 0], sizes = [16, 256], strides = [1, 1]} : vector<16x384xf32> to vector<16x256xf32>
    %214 = arith.addf %212, %213 : vector<16x256xf32>
    %215 = arith.negf %214 : vector<16x256xf32>
    %216 = math.exp %215 : vector<16x256xf32>
    %cst_46 = arith.constant 1.000000e+00 : f32
    %217 = vector.broadcast %cst_46 : f32 to vector<16x256xf32>
    %218 = arith.addf %217, %216 : vector<16x256xf32>
    %219 = arith.divf %217, %218 : vector<16x256xf32>
    %220 = vector.extract_strided_slice %219 {offsets = [0, 0], sizes = [16, 128], strides = [1, 1]} : vector<16x256xf32> to vector<16x128xf32>
    %221 = vector.extract_strided_slice %219 {offsets = [0, 128], sizes = [16, 128], strides = [1, 1]} : vector<16x256xf32> to vector<16x128xf32>
    %222 = vector.extract_strided_slice %209 {offsets = [0, 256], sizes = [16, 128], strides = [1, 1]} : vector<16x384xf32> to vector<16x128xf32>
    %223 = vector.extract_strided_slice %211 {offsets = [0, 256], sizes = [16, 128], strides = [1, 1]} : vector<16x384xf32> to vector<16x128xf32>
    %224 = arith.addf %223, %16 : vector<16x128xf32>
    %225 = arith.mulf %220, %224 : vector<16x128xf32>
    %226 = arith.addf %222, %225 : vector<16x128xf32>
    %227 = math.tanh %226 : vector<16x128xf32>
    %228 = arith.subf %205, %227 : vector<16x128xf32>
    %229 = arith.mulf %221, %228 : vector<16x128xf32>
    %230 = arith.addf %227, %229 : vector<16x128xf32>
    %231 = arith.addi %18, %c6_i32 : i32
    %232 = vector.broadcast %231 : i32 to vector<16x1xi32>
    %233 = arith.cmpi slt, %232, %17 : vector<16x1xi32>
    %234 = vector.shape_cast %233 : vector<16x1xi1> to vector<16x1xi1>
    %235 = vector.broadcast %234 : vector<16x1xi1> to vector<16x128xi1>
    %236 = arith.select %235, %230, %205 : vector<16x128xi1>, vector<16x128xf32>
    %c7_i32 = arith.constant 7 : i32
    %237 = arith.index_cast %c7_i32 : i32 to index
    %c0_47 = arith.constant 0 : index
    %c0_48 = arith.constant 0 : index
    %238 = vector.load %arg12[%237, %c0_47, %c0_48] : memref<8x16x384xbf16, #tpu.memory_space<vmem>>, vector<1x16x384xbf16>
    %239 = vector.shape_cast %238 : vector<1x16x384xbf16> to vector<16x384xbf16>
    %240 = arith.extf %239 : vector<16x384xbf16> to vector<16x384xf32>
    %241 = arith.truncf %236 : vector<16x128xf32> to vector<16x128xbf16>
    %cst_49 = arith.constant dense<0.000000e+00> : vector<16x384xf32>
    %242 = tpu.matmul %241, %13, %cst_49 {dimension_numbers = #tpu.dot_dimension_numbers<[1], [0], [0], [1], [0, 0, 1, 1], [], []>} : vector<16x128xbf16>, vector<128x384xbf16>, vector<16x384xf32> -> vector<16x384xf32>
    %243 = vector.extract_strided_slice %240 {offsets = [0, 0], sizes = [16, 256], strides = [1, 1]} : vector<16x384xf32> to vector<16x256xf32>
    %244 = vector.extract_strided_slice %242 {offsets = [0, 0], sizes = [16, 256], strides = [1, 1]} : vector<16x384xf32> to vector<16x256xf32>
    %245 = arith.addf %243, %244 : vector<16x256xf32>
    %246 = arith.negf %245 : vector<16x256xf32>
    %247 = math.exp %246 : vector<16x256xf32>
    %cst_50 = arith.constant 1.000000e+00 : f32
    %248 = vector.broadcast %cst_50 : f32 to vector<16x256xf32>
    %249 = arith.addf %248, %247 : vector<16x256xf32>
    %250 = arith.divf %248, %249 : vector<16x256xf32>
    %251 = vector.extract_strided_slice %250 {offsets = [0, 0], sizes = [16, 128], strides = [1, 1]} : vector<16x256xf32> to vector<16x128xf32>
    %252 = vector.extract_strided_slice %250 {offsets = [0, 128], sizes = [16, 128], strides = [1, 1]} : vector<16x256xf32> to vector<16x128xf32>
    %253 = vector.extract_strided_slice %240 {offsets = [0, 256], sizes = [16, 128], strides = [1, 1]} : vector<16x384xf32> to vector<16x128xf32>
    %254 = vector.extract_strided_slice %242 {offsets = [0, 256], sizes = [16, 128], strides = [1, 1]} : vector<16x384xf32> to vector<16x128xf32>
    %255 = arith.addf %254, %16 : vector<16x128xf32>
    %256 = arith.mulf %251, %255 : vector<16x128xf32>
    %257 = arith.addf %253, %256 : vector<16x128xf32>
    %258 = math.tanh %257 : vector<16x128xf32>
    %259 = arith.subf %236, %258 : vector<16x128xf32>
    %260 = arith.mulf %252, %259 : vector<16x128xf32>
    %261 = arith.addf %258, %260 : vector<16x128xf32>
    %262 = arith.addi %18, %c7_i32 : i32
    %263 = vector.broadcast %262 : i32 to vector<16x1xi32>
    %264 = arith.cmpi slt, %263, %17 : vector<16x1xi32>
    %265 = vector.shape_cast %264 : vector<16x1xi1> to vector<16x1xi1>
    %266 = vector.broadcast %265 : vector<16x1xi1> to vector<16x128xi1>
    %267 = arith.select %266, %261, %236 : vector<16x128xi1>, vector<16x128xf32>
    %c8_i32_51 = arith.constant 8 : i32
    %c0_52 = arith.constant 0 : index
    %c0_53 = arith.constant 0 : index
    %268 = vector.load %arg13[%c0_52, %c0_53] : memref<16x128xf32, #tpu.memory_space<vmem>>, vector<16x128xf32>
    tpu.vector_store %arg13[%c0_52, %c0_53], %267 {strides = array<i32>} : memref<16x128xf32, #tpu.memory_space<vmem>>, vector<16x128xf32>,
    %c0_i32_54 = arith.constant 0 : i32
    %269 = arith.cmpi eq, %arg1, %c0_i32_54 : i32
    %270 = arith.extui %269 : i1 to i32
    %c0_i32_55 = arith.constant 0 : i32
    %271 = arith.cmpi ne, %270, %c0_i32_55 : i32
    scf.if %271 {
      %272 = arith.truncf %267 : vector<16x128xf32> to vector<16x128xbf16>
      %c0_56 = arith.constant 0 : index
      %c0_57 = arith.constant 0 : index
      %273 = vector.load %arg9[%c0_56, %c0_57] : memref<128x128xbf16, #tpu.memory_space<vmem>>, vector<128x128xbf16>
      %cst_58 = arith.constant dense<0.000000e+00> : vector<16x128xf32>
      %274 = tpu.matmul %272, %273, %cst_58 {dimension_numbers = #tpu.dot_dimension_numbers<[1], [0], [0], [1], [0, 0, 1, 1], [], []>} : vector<16x128xbf16>, vector<128x128xbf16>, vector<16x128xf32> -> vector<16x128xf32>
      %c0_59 = arith.constant 0 : index
      %c0_60 = arith.constant 0 : index
      %275 = vector.load %arg10[%c0_59, %c0_60] : memref<1x128xf32, #tpu.memory_space<vmem>>, vector<1x128xf32>
      %276 = vector.broadcast %275 : vector<1x128xf32> to vector<16x128xf32>
      %277 = arith.addf %274, %276 : vector<16x128xf32>
      %c0_61 = arith.constant 0 : index
      %c0_62 = arith.constant 0 : index
      %278 = vector.load %arg11[%c0_61, %c0_62] : memref<16x128xf32, #tpu.memory_space<vmem>>, vector<16x128xf32>
      tpu.vector_store %arg11[%c0_61, %c0_62], %277 {strides = array<i32>} : memref<16x128xf32, #tpu.memory_space<vmem>>, vector<16x128xf32>,
    } else {
    }
    return
  }
  func.func @transform_0(%arg0: i32, %arg1: i32) -> (i32, i32, i32) {
    %c0_i32 = arith.constant 0 : i32
    %c0_i32_0 = arith.constant 0 : i32
    return %arg1, %arg0, %c0_i32 : i32, i32, i32
  }
  func.func @transform_1(%arg0: i32, %arg1: i32) -> (i32, i32) {
    %c0_i32 = arith.constant 0 : i32
    %c0_i32_0 = arith.constant 0 : i32
    return %arg0, %c0_i32 : i32, i32
  }
  func.func @transform_2(%arg0: i32, %arg1: i32) -> (i32, i32) {
    %c0_i32 = arith.constant 0 : i32
    %c0_i32_0 = arith.constant 0 : i32
    return %arg0, %c0_i32 : i32, i32
  }
  func.func @transform_3(%arg0: i32, %arg1: i32) -> (i32, i32) {
    %c0_i32 = arith.constant 0 : i32
    %c0_i32_0 = arith.constant 0 : i32
    %c0_i32_1 = arith.constant 0 : i32
    return %c0_i32, %c0_i32_0 : i32, i32
  }
  func.func @transform_4(%arg0: i32, %arg1: i32) -> (i32, i32) {
    %c0_i32 = arith.constant 0 : i32
    %c0_i32_0 = arith.constant 0 : i32
    %c0_i32_1 = arith.constant 0 : i32
    return %c0_i32, %c0_i32_0 : i32, i32
  }
  func.func @transform_5(%arg0: i32, %arg1: i32) -> (i32, i32) {
    %c0_i32 = arith.constant 0 : i32
    %c0_i32_0 = arith.constant 0 : i32
    %c0_i32_1 = arith.constant 0 : i32
    return %c0_i32, %c0_i32_0 : i32, i32
  }
  func.func @transform_6(%arg0: i32, %arg1: i32) -> (i32, i32) {
    %c0_i32 = arith.constant 0 : i32
    %c0_i32_0 = arith.constant 0 : i32
    %c0_i32_1 = arith.constant 0 : i32
    return %c0_i32, %c0_i32_0 : i32, i32
  }
  func.func @transform_7(%arg0: i32, %arg1: i32) -> (i32, i32) {
    %c0_i32 = arith.constant 0 : i32
    %c0_i32_0 = arith.constant 0 : i32
    %c0_i32_1 = arith.constant 0 : i32
    return %c0_i32, %c0_i32_0 : i32, i32
  }
  func.func @transform_8(%arg0: i32, %arg1: i32) -> (i32, i32) {
    %c0_i32 = arith.constant 0 : i32
    %c0_i32_0 = arith.constant 0 : i32
    %c0_i32_1 = arith.constant 0 : i32
    return %c0_i32, %c0_i32_0 : i32, i32
  }
  func.func @transform_9(%arg0: i32, %arg1: i32) -> (i32, i32) {
    %c0_i32 = arith.constant 0 : i32
    %c0_i32_0 = arith.constant 0 : i32
    return %arg0, %c0_i32 : i32, i32
  }
}

</mosaic_0001>

<llo_original>
// kernel: tpu_custom_call.1
$region0: #{tpu_custom_call.1}
  #allocation0 [shape = 'u32[]', space=smem, size = 0x4, offset = 0x4, fixed_abs, tag = 'smem constant byte address 0x4 - core index']
  #allocation1 [shape = 'u32[144,128]{1,0:T(1,128)}', space=vmem, size = 0x12000, scoped, tag = 'internal scratch']
  #allocation2 [shape = 'bf16[8,16,384]{2,1,0:T(8,128)(2,1)}', space=vmem, size = 0x18000, scoped, tag = 'scratch operand']
  #allocation3 [shape = 'f32[16,128]{1,0:T(8,128)}', space=vmem, size = 0x2000, scoped, tag = 'scratch operand']
  %s0 = inlined_call_operand.hbm [shape: bf16[8,16,128], index: 0, kind: input, shape index: {}]
  %s1 = inlined_call_operand.vmem [shape: s32[16,1], index: 1, kind: input, shape index: {}]
  %s2 = inlined_call_operand.vmem [shape: f32[16,128], index: 2, kind: input, shape index: {}]
  %s3 = inlined_call_operand.hbm [shape: bf16[128,384], index: 3, kind: input, shape index: {}]
  %s4 = inlined_call_operand.hbm [shape: bf16[128,384], index: 4, kind: input, shape index: {}]
  %s5 = inlined_call_operand.vmem [shape: f32[1,384], index: 5, kind: input, shape index: {}]
  %s6 = inlined_call_operand.vmem [shape: f32[1,128], index: 6, kind: input, shape index: {}]
  %s7 = inlined_call_operand.hbm [shape: bf16[128,128], index: 7, kind: input, shape index: {}]
  %s8 = inlined_call_operand.vmem [shape: f32[1,128], index: 8, kind: input, shape index: {}]
  %s9 = inlined_call_operand.hbm [shape: f32[16,128], index: 9, kind: output, shape index: {}]
  %s10 = sld [smem:[#allocation0]]
  $region70: #{tpu_custom_call.1} parent=0
    _
  %s12 = ssub.s32 1, %s10
  %s13 = scalar_select 0, %s12, %s10
  $region1: #{tpu_custom_call.1} parent=0
    #allocation4 [shape = 'u8[32768]{0}', space=vmem, size = 0x8000, scoped, tag = 'input window, operand 0, single buffered']
    #allocation5 [shape = 's32[1]{0}', space=sflag, size = 0x4, scoped, tag = 'scoped memory for tpu_custom_call.1']
    #allocation6 [shape = 's32[1]{0}', space=sflag, size = 0x4, scoped, tag = 'scoped memory for tpu_custom_call.1']
    #allocation7 [shape = 'u8[98304]{0}', space=vmem, size = 0x18000, scoped, tag = 'input window, operand 3, single buffered']
    #allocation8 [shape = 's32[1]{0}', space=sflag, size = 0x4, scoped, tag = 'scoped memory for tpu_custom_call.1']
    #allocation9 [shape = 'u8[98304]{0}', space=vmem, size = 0x18000, scoped, tag = 'input window, operand 4, single buffered']
    #allocation10 [shape = 'u8[32768]{0}', space=vmem, size = 0x8000, scoped, tag = 'input window, operand 7, single buffered']
    #allocation11 [shape = 's32[1]{0}', space=sflag, size = 0x4, scoped, tag = 'scoped memory for tpu_custom_call.1']
    #allocation12 [shape = 'u8[8192]{0}', space=vmem, size = 0x2000, scoped, tag = 'output window, operand 0, single buffered']
    %14 = vsyncpa [#allocation5], 0
    %15 = vsyncpa [#allocation8], 0
    %16 = vsyncpa [#allocation11], 0
    %17 = vsyncpa [#allocation6], 0
    // Predicated region
    $region2: #{tpu_custom_call.1} parent=1 // pred_check
      _
    $region3: #{tpu_custom_call.1} parent=1 // pred_check_branch
      %19 = sbr.rel (0) target = $region5
    $region4: #{tpu_custom_call.1} parent=1 // pred_region
      %s21 = ssub.s32 1024, 1024
      %22 = vsyncadd [#allocation5], %s21
      %s23 = sshll.u32 [#allocation4], 4
      %s24 = int_to_ptr.vmem [resolvable:$true] %s23
      %29 = dma.hbm_to_vmem [thread:$0]  %s0, 1024, %s24, [#allocation5], 64, 64, 4
    $region5: #{tpu_custom_call.1} parent=1 // pred_fallthru
      _
    // Predicated region
    $region6: #{tpu_custom_call.1} parent=1 // pred_check
      _
    $region7: #{tpu_custom_call.1} parent=1 // pred_check_branch
      %31 = sbr.rel (0) target = $region9
    $region8: #{tpu_custom_call.1} parent=1 // pred_region
      _
    $region9: #{tpu_custom_call.1} parent=1 // pred_fallthru
      _
    // Predicated region
    $region10: #{tpu_custom_call.1} parent=1 // pred_check
      _
    $region11: #{tpu_custom_call.1} parent=1 // pred_check_branch
      %33 = sbr.rel (0) target = $region13
    $region12: #{tpu_custom_call.1} parent=1 // pred_region
      _
    $region13: #{tpu_custom_call.1} parent=1 // pred_fallthru
      _
    // Predicated region
    $region14: #{tpu_custom_call.1} parent=1 // pred_check
      _
    $region15: #{tpu_custom_call.1} parent=1 // pred_check_branch
      %35 = sbr.rel (0) target = $region17
    $region16: #{tpu_custom_call.1} parent=1 // pred_region
      %s37 = ssub.s32 3072, 3072
      %38 = vsyncadd [#allocation8], %s37
      %s39 = sshll.u32 [#allocation7], 4
      %s40 = int_to_ptr.vmem [resolvable:$true] %s39
      %45 = dma.hbm_to_vmem [thread:$0]  %s3, 3072, %s40, [#allocation8], 192, 192, 12
    $region17: #{tpu_custom_call.1} parent=1 // pred_fallthru
      _
    // Predicated region
    $region18: #{tpu_custom_call.1} parent=1 // pred_check
      _
    $region19: #{tpu_custom_call.1} parent=1 // pred_check_branch
      %47 = sbr.rel (0) target = $region21
    $region20: #{tpu_custom_call.1} parent=1 // pred_region
      %s49 = ssub.s32 3072, 3072
      %50 = vsyncadd [#allocation8], %s49
      %s51 = sshll.u32 [#allocation9], 4
      %s52 = int_to_ptr.vmem [resolvable:$true] %s51
      %57 = dma.hbm_to_vmem [thread:$0]  %s4, 3072, %s52, [#allocation8], 192, 192, 12
    $region21: #{tpu_custom_call.1} parent=1 // pred_fallthru
      _
    // Predicated region
    $region22: #{tpu_custom_call.1} parent=1 // pred_check
      _
    $region23: #{tpu_custom_call.1} parent=1 // pred_check_branch
      %59 = sbr.rel (0) target = $region25
    $region24: #{tpu_custom_call.1} parent=1 // pred_region
      _
    $region25: #{tpu_custom_call.1} parent=1 // pred_fallthru
      _
    // Predicated region
    $region26: #{tpu_custom_call.1} parent=1 // pred_check
      _
    $region27: #{tpu_custom_call.1} parent=1 // pred_check_branch
      %61 = sbr.rel (0) target = $region29
    $region28: #{tpu_custom_call.1} parent=1 // pred_region
      _
    $region29: #{tpu_custom_call.1} parent=1 // pred_fallthru
      _
    // Predicated region
    $region30: #{tpu_custom_call.1} parent=1 // pred_check
      _
    $region31: #{tpu_custom_call.1} parent=1 // pred_check_branch
      %63 = sbr.rel (0) target = $region33
    $region32: #{tpu_custom_call.1} parent=1 // pred_region
      %s65 = ssub.s32 1024, 1024
      %66 = vsyncadd [#allocation11], %s65
      %s67 = sshll.u32 [#allocation10], 4
      %s68 = int_to_ptr.vmem [resolvable:$true] %s67
      %73 = dma.hbm_to_vmem [thread:$0]  %s7, 1024, %s68, [#allocation11], 64, 64, 4
    $region33: #{tpu_custom_call.1} parent=1 // pred_fallthru
      _
    // Predicated region
    $region34: #{tpu_custom_call.1} parent=1 // pred_check
      _
    $region35: #{tpu_custom_call.1} parent=1 // pred_check_branch
      %75 = sbr.rel (0) target = $region37
    $region36: #{tpu_custom_call.1} parent=1 // pred_region
      _
    $region37: #{tpu_custom_call.1} parent=1 // pred_fallthru
      _
    // Predicated region
    $region38: #{tpu_custom_call.1} parent=1 // pred_check
      _
    $region39: #{tpu_custom_call.1} parent=1 // pred_check_branch
      %77 = sbr.rel (0) target = $region41
    $region40: #{tpu_custom_call.1} parent=1 // pred_region
      %78 = dma.done [#allocation5], 1024
    $region41: #{tpu_custom_call.1} parent=1 // pred_fallthru
      _
    // Predicated region
    $region42: #{tpu_custom_call.1} parent=1 // pred_check
      _
    $region43: #{tpu_custom_call.1} parent=1 // pred_check_branch
      %80 = sbr.rel (0) target = $region45
    $region44: #{tpu_custom_call.1} parent=1 // pred_region
      %81 = dma.done [#allocation8], 3072
    $region45: #{tpu_custom_call.1} parent=1 // pred_fallthru
      _
    // Predicated region
    $region46: #{tpu_custom_call.1} parent=1 // pred_check
      _
    $region47: #{tpu_custom_call.1} parent=1 // pred_check_branch
      %83 = sbr.rel (0) target = $region49
    $region48: #{tpu_custom_call.1} parent=1 // pred_region
      %84 = dma.done [#allocation8], 3072
    $region49: #{tpu_custom_call.1} parent=1 // pred_fallthru
      _
    // Predicated region
    $region50: #{tpu_custom_call.1} parent=1 // pred_check
      _
    $region51: #{tpu_custom_call.1} parent=1 // pred_check_branch
      %86 = sbr.rel (0) target = $region53
    $region52: #{tpu_custom_call.1} parent=1 // pred_region
      %87 = dma.done [#allocation11], 1024
    $region53: #{tpu_custom_call.1} parent=1 // pred_fallthru
      _
    %p89 = scmp.eq.s32.totalorder 0, 0
    // Predicated region
    $region54: #{tpu_custom_call.1} parent=1 // pred_check
      %p90 = pneg %p89
    $region55: #{tpu_custom_call.1} parent=1 // pred_check_branch
      %92 = sbr.rel (%p90) target = $region57
    $region56: #{tpu_custom_call.1} parent=1 // pred_region
      %v93 = vld [vmem:[%s2] sm:$0xff]
      %v94 = vld [vmem:[%s2 + $0x8] sm:$0xff]
      %95 = vst [vmem:[#allocation3] sm:$0xff] %v93
      %96 = vst [vmem:[#allocation3 + $0x8] sm:$0xff] %v94
    $region57: #{tpu_custom_call.1} parent=1 // pred_fallthru
      _
    %v97 = vld [vmem:[#allocation4] sm:$0xf]
    %v98 = vld [vmem:[#allocation4 + $0x4] sm:$0xf]
    %v99 = vld [vmem:[#allocation4 + $0x8] sm:$0xf]
    %v100 = vld [vmem:[#allocation4 + $0xc] sm:$0xf]
    %v101 = vld [vmem:[#allocation4 + $0x10] sm:$0xf]
    %v102 = vld [vmem:[#allocation4 + $0x14] sm:$0xf]
    %v103 = vld [vmem:[#allocation4 + $0x18] sm:$0xf]
    %v104 = vld [vmem:[#allocation4 + $0x1c] sm:$0xf]
    %v105 = vld [vmem:[#allocation4 + $0x20] sm:$0xf]
    %v106 = vld [vmem:[#allocation4 + $0x24] sm:$0xf]
    %v107 = vld [vmem:[#allocation4 + $0x28] sm:$0xf]
    %v108 = vld [vmem:[#allocation4 + $0x2c] sm:$0xf]
    %v109 = vld [vmem:[#allocation4 + $0x30] sm:$0xf]
    %v110 = vld [vmem:[#allocation4 + $0x34] sm:$0xf]
    %v111 = vld [vmem:[#allocation4 + $0x38] sm:$0xf]
    %v112 = vld [vmem:[#allocation4 + $0x3c] sm:$0xf]
    %v113 = vld [vmem:[#allocation7] sm:$0xff]
    %v114 = vld [vmem:[#allocation7 + $0x8] sm:$0xf]
    %v115 = vld [vmem:[#allocation7 + $0xc] sm:$0xff]
    %v116 = vld [vmem:[#allocation7 + $0x14] sm:$0xf]
    %v117 = vld [vmem:[#allocation7 + $0x18] sm:$0xff]
    %v118 = vld [vmem:[#allocation7 + $0x20] sm:$0xf]
    %v119 = vld [vmem:[#allocation7 + $0x24] sm:$0xff]
    %v120 = vld [vmem:[#allocation7 + $0x2c] sm:$0xf]
    %v121 = vld [vmem:[#allocation7 + $0x30] sm:$0xff]
    %v122 = vld [vmem:[#allocation7 + $0x38] sm:$0xf]
    %v123 = vld [vmem:[#allocation7 + $0x3c] sm:$0xff]
    %v124 = vld [vmem:[#allocation7 + $0x44] sm:$0xf]
    %v125 = vld [vmem:[#allocation7 + $0x48] sm:$0xff]
    %v126 = vld [vmem:[#allocation7 + $0x50] sm:$0xf]
    %v127 = vld [vmem:[#allocation7 + $0x54] sm:$0xff]
    %v128 = vld [vmem:[#allocation7 + $0x5c] sm:$0xf]
    %v129 = vld [vmem:[#allocation7 + $0x60] sm:$0xff]
    %v130 = vld [vmem:[#allocation7 + $0x68] sm:$0xf]
    %v131 = vld [vmem:[#allocation7 + $0x6c] sm:$0xff]
    %v132 = vld [vmem:[#allocation7 + $0x74] sm:$0xf]
    %v133 = vld [vmem:[#allocation7 + $0x78] sm:$0xff]
    %v134 = vld [vmem:[#allocation7 + $0x80] sm:$0xf]
    %v135 = vld [vmem:[#allocation7 + $0x84] sm:$0xff]
    %v136 = vld [vmem:[#allocation7 + $0x8c] sm:$0xf]
    %v137 = vld [vmem:[#allocation7 + $0x90] sm:$0xff]
    %v138 = vld [vmem:[#allocation7 + $0x98] sm:$0xf]
    %v139 = vld [vmem:[#allocation7 + $0x9c] sm:$0xff]
    %v140 = vld [vmem:[#allocation7 + $0xa4] sm:$0xf]
    %v141 = vld [vmem:[#allocation7 + $0xa8] sm:$0xff]
    %v142 = vld [vmem:[#allocation7 + $0xb0] sm:$0xf]
    %v143 = vld [vmem:[#allocation7 + $0xb4] sm:$0xff]
    %v144 = vld [vmem:[#allocation7 + $0xbc] sm:$0xf]
    %v145 = vld [vmem:[%s5] sm:$0x7]
    %v147 = vlaneseq
    %v148 = vshrl.u32 %v147, 7
    %v149 = vsub.s32 0, %v148
    %v150 = vrot.slane %v145, %v149
    %v151 = vlaneseq
    %v152 = vshrl.u32 %v151, 7
    %v153 = vsub.s32 1, %v152
    %v154 = vrot.slane %v145, %v153
    %v155 = vlaneseq
    %v156 = vshrl.u32 %v155, 7
    %v157 = vsub.s32 2, %v156
    %v158 = vrot.slane %v145, %v157
    %v178 = vunpack.c.l.b16 %v97
    %v179 = vunpack.c.l.b16 %v98
    %v180 = vunpack.c.l.b16 %v99
    %v181 = vunpack.c.l.b16 %v100
    %v182 = vunpack.c.l.b16 %v101
    %v183 = vunpack.c.l.b16 %v102
    %v184 = vunpack.c.l.b16 %v103
    %v185 = vunpack.c.l.b16 %v104
    %v186 = vunpack.c.l.b16 %v105
    %v187 = vunpack.c.l.b16 %v106
    %v188 = vunpack.c.l.b16 %v107
    %v189 = vunpack.c.l.b16 %v108
    %v190 = vunpack.c.l.b16 %v109
    %v191 = vunpack.c.l.b16 %v110
    %v192 = vunpack.c.l.b16 %v111
    %v193 = vunpack.c.l.b16 %v112
    %v194 = vpack.c.b16 %v179, %v178
    %v195 = vpack.c.b16 %v181, %v180
    %v196 = vpack.c.b16 %v183, %v182
    %v197 = vpack.c.b16 %v185, %v184
    %v198 = vpack.c.b16 %v187, %v186
    %v199 = vpack.c.b16 %v189, %v188
    %v200 = vpack.c.b16 %v191, %v190
    %v201 = vpack.c.b16 %v193, %v192
    %v242 = vunpack.c.l.b16 %v113
    %v243 = vunpack.c.h.b16 %v113
    %v244 = vunpack.c.l.b16 %v114
    %v245 = vunpack.c.l.b16 %v115
    %v246 = vunpack.c.h.b16 %v115
    %v247 = vunpack.c.l.b16 %v116
    %v248 = vunpack.c.l.b16 %v117
    %v249 = vunpack.c.h.b16 %v117
    %v250 = vunpack.c.l.b16 %v118
    %v251 = vunpack.c.l.b16 %v119
    %v252 = vunpack.c.h.b16 %v119
    %v253 = vunpack.c.l.b16 %v120
    %v254 = vunpack.c.l.b16 %v121
    %v255 = vunpack.c.h.b16 %v121
    %v256 = vunpack.c.l.b16 %v122
    %v257 = vunpack.c.l.b16 %v123
    %v258 = vunpack.c.h.b16 %v123
    %v259 = vunpack.c.l.b16 %v124
    %v260 = vunpack.c.l.b16 %v125
    %v261 = vunpack.c.h.b16 %v125
    %v262 = vunpack.c.l.b16 %v126
    %v263 = vunpack.c.l.b16 %v127
    %v264 = vunpack.c.h.b16 %v127
    %v265 = vunpack.c.l.b16 %v128
    %v266 = vunpack.c.l.b16 %v129
    %v267 = vunpack.c.h.b16 %v129
    %v268 = vunpack.c.l.b16 %v130
    %v269 = vunpack.c.l.b16 %v131
    %v270 = vunpack.c.h.b16 %v131
    %v271 = vunpack.c.l.b16 %v132
    %v272 = vunpack.c.l.b16 %v133
    %v273 = vunpack.c.h.b16 %v133
    %v274 = vunpack.c.l.b16 %v134
    %v275 = vunpack.c.l.b16 %v135
    %v276 = vunpack.c.h.b16 %v135
    %v277 = vunpack.c.l.b16 %v136
    %v278 = vunpack.c.l.b16 %v137
    %v279 = vunpack.c.h.b16 %v137
    %v280 = vunpack.c.l.b16 %v138
    %v281 = vunpack.c.l.b16 %v139
    %v282 = vunpack.c.h.b16 %v139
    %v283 = vunpack.c.l.b16 %v140
    %v284 = vunpack.c.l.b16 %v141
    %v285 = vunpack.c.h.b16 %v141
    %v286 = vunpack.c.l.b16 %v142
    %v287 = vunpack.c.l.b16 %v143
    %v288 = vunpack.c.h.b16 %v143
    %v289 = vunpack.c.l.b16 %v144
    %v290 = vpack.c.b16 %v245, %v242
    %v291 = vpack.c.b16 %v246, %v243
    %v292 = vpack.c.b16 %v247, %v244
    %v293 = vpack.c.b16 %v251, %v248
    %v294 = vpack.c.b16 %v252, %v249
    %v295 = vpack.c.b16 %v253, %v250
    %v296 = vpack.c.b16 %v257, %v254
    %v297 = vpack.c.b16 %v258, %v255
    %v298 = vpack.c.b16 %v259, %v256
    %v299 = vpack.c.b16 %v263, %v260
    %v300 = vpack.c.b16 %v264, %v261
    %v301 = vpack.c.b16 %v265, %v262
    %v302 = vpack.c.b16 %v269, %v266
    %v303 = vpack.c.b16 %v270, %v267
    %v304 = vpack.c.b16 %v271, %v268
    %v305 = vpack.c.b16 %v275, %v272
    %v306 = vpack.c.b16 %v276, %v273
    %v307 = vpack.c.b16 %v277, %v274
    %v308 = vpack.c.b16 %v281, %v278
    %v309 = vpack.c.b16 %v282, %v279
    %v310 = vpack.c.b16 %v283, %v280
    %v311 = vpack.c.b16 %v287, %v284
    %v312 = vpack.c.b16 %v288, %v285
    %v313 = vpack.c.b16 %v289, %v286
    %338 = vmatprep.subr.bf16.mxu0 %v312
    %339 = vmatpush1.bf16.msra.mxu0 %v311
    %340 = vmatprep.subr.bf16.mxu0 %v309
    %341 = vmatpush1.bf16.msra.mxu0 %v308
    %342 = vmatprep.subr.bf16.mxu0 %v306
    %343 = vmatpush1.bf16.msra.mxu0 %v305
    %344 = vmatprep.subr.bf16.mxu0 %v303
    %345 = vmatpush1.bf16.msra.mxu0 %v302
    %346 = vmatprep.subr.bf16.mxu0 %v300
    %347 = vmatpush1.bf16.msra.mxu0 %v299
    %348 = vmatprep.subr.bf16.mxu0 %v297
    %349 = vmatpush1.bf16.msra.mxu0 %v296
    %350 = vmatprep.subr.bf16.mxu0 %v294
    %351 = vmatpush1.bf16.msra.mxu0 %v293
    %352 = vmatprep.subr.bf16.mxu0 %v291
    %353 = vmatpush1.bf16.msra.mxu0 %v290
    %354 = vmatprep.subr.bf16.mxu0 0
    %355 = vmatpush2.bf16.msra.mxu0 0
    %356 = vmatprep.subr.bf16.mxu0 0
    %357 = vmatpush2.bf16.msra.mxu0 0
    %358 = vmatprep.subr.bf16.mxu0 0
    %359 = vmatpush2.bf16.msra.mxu0 0
    %360 = vmatprep.subr.bf16.mxu0 0
    %361 = vmatpush2.bf16.msra.mxu0 0
    %362 = vmatprep.subr.bf16.mxu0 0
    %363 = vmatpush2.bf16.msra.mxu0 0
    %364 = vmatprep.subr.bf16.mxu0 0
    %365 = vmatpush2.bf16.msra.mxu0 0
    %366 = vmatprep.subr.bf16.mxu0 0
    %367 = vmatpush2.bf16.msra.mxu0 0
    %368 = vmatprep.subr.bf16.mxu0 0
    %369 = vmatpush2.bf16.msra.mxu0 0
    %370 = vmatprep.mubr.bf16.mxu0 0
    %371 = vmatmul.mubr.bf16.gmra.mxu0 %v194
    %v372 = vpop.f32.mrf.mxu0
    %v373 = vadd.f32 %v150, %v372
    %v374 = vpop.f32.mrf.mxu0
    %v375 = vadd.f32 %v154, %v374
    %v376 = vpop.f32.mrf.mxu0
    %v377 = vadd.f32 %v150, %v376
    %v378 = vpop.f32.mrf.mxu0
    %v379 = vadd.f32 %v154, %v378
    %380 = vmatprep.mubr.bf16.mxu0 0
    %381 = vmatmul.mubr.bf16.gmra.mxu0 %v195
    %v382 = vpop.f32.mrf.mxu0
    %v383 = vadd.f32 %v150, %v382
    %v384 = vpop.f32.mrf.mxu0
    %v385 = vadd.f32 %v154, %v384
    %v386 = vpop.f32.mrf.mxu0
    %v387 = vadd.f32 %v150, %v386
    %v388 = vpop.f32.mrf.mxu0
    %v389 = vadd.f32 %v154, %v388
    %390 = vmatprep.mubr.bf16.mxu0 0
    %391 = vmatmul.mubr.bf16.gmra.mxu0 %v196
    %v392 = vpop.f32.mrf.mxu0
    %v393 = vadd.f32 %v150, %v392
    %v394 = vpop.f32.mrf.mxu0
    %v395 = vadd.f32 %v154, %v394
    %v396 = vpop.f32.mrf.mxu0
    %v397 = vadd.f32 %v150, %v396
    %v398 = vpop.f32.mrf.mxu0
    %v399 = vadd.f32 %v154, %v398
    %400 = vmatprep.mubr.bf16.mxu0 0
    %401 = vmatmul.mubr.bf16.gmra.mxu0 %v197
    %v402 = vpop.f32.mrf.mxu0
    %v403 = vadd.f32 %v150, %v402
    %v404 = vpop.f32.mrf.mxu0
    %v405 = vadd.f32 %v154, %v404
    %v406 = vpop.f32.mrf.mxu0
    %v407 = vadd.f32 %v150, %v406
    %v408 = vpop.f32.mrf.mxu0
    %v409 = vadd.f32 %v154, %v408
    %410 = vmatprep.mubr.bf16.mxu0 0
    %411 = vmatmul.mubr.bf16.gmra.mxu0 %v198
    %v412 = vpop.f32.mrf.mxu0
    %v413 = vadd.f32 %v150, %v412
    %v414 = vpop.f32.mrf.mxu0
    %v415 = vadd.f32 %v154, %v414
    %v416 = vpop.f32.mrf.mxu0
    %v417 = vadd.f32 %v150, %v416
    %v418 = vpop.f32.mrf.mxu0
    %v419 = vadd.f32 %v154, %v418
    %420 = vmatprep.mubr.bf16.mxu0 0
    %421 = vmatmul.mubr.bf16.gmra.mxu0 %v199
    %v422 = vpop.f32.mrf.mxu0
    %v423 = vadd.f32 %v150, %v422
    %v424 = vpop.f32.mrf.mxu0
    %v425 = vadd.f32 %v154, %v424
    %v426 = vpop.f32.mrf.mxu0
    %v427 = vadd.f32 %v150, %v426
    %v428 = vpop.f32.mrf.mxu0
    %v429 = vadd.f32 %v154, %v428
    %430 = vmatprep.mubr.bf16.mxu0 0
    %431 = vmatmul.mubr.bf16.gmra.mxu0 %v200
    %v432 = vpop.f32.mrf.mxu0
    %v433 = vadd.f32 %v150, %v432
    %v434 = vpop.f32.mrf.mxu0
    %v435 = vadd.f32 %v154, %v434
    %v436 = vpop.f32.mrf.mxu0
    %v437 = vadd.f32 %v150, %v436
    %v438 = vpop.f32.mrf.mxu0
    %v439 = vadd.f32 %v154, %v438
    %440 = vmatprep.mubr.bf16.mxu0 0
    %441 = vmatmul.mubr.bf16.gmra.mxu0 %v201
    %v442 = vpop.f32.mrf.mxu0
    %v443 = vadd.f32 %v150, %v442
    %v444 = vpop.f32.mrf.mxu0
    %v445 = vadd.f32 %v154, %v444
    %v446 = vpop.f32.mrf.mxu0
    %v447 = vadd.f32 %v150, %v446
    %v448 = vpop.f32.mrf.mxu0
    %v449 = vadd.f32 %v154, %v448
    %450 = vdwg.mxu0
    %451 = vmatprep.subr.bf16.mxu0 0
    %452 = vmatpush1.bf16.msra.mxu0 %v313
    %453 = vmatprep.subr.bf16.mxu0 0
    %454 = vmatpush1.bf16.msra.mxu0 %v310
    %455 = vmatprep.subr.bf16.mxu0 0
    %456 = vmatpush1.bf16.msra.mxu0 %v307
    %457 = vmatprep.subr.bf16.mxu0 0
    %458 = vmatpush1.bf16.msra.mxu0 %v304
    %459 = vmatprep.subr.bf16.mxu0 0
    %460 = vmatpush1.bf16.msra.mxu0 %v301
    %461 = vmatprep.subr.bf16.mxu0 0
    %462 = vmatpush1.bf16.msra.mxu0 %v298
    %463 = vmatprep.subr.bf16.mxu0 0
    %464 = vmatpush1.bf16.msra.mxu0 %v295
    %465 = vmatprep.subr.bf16.mxu0 0
    %466 = vmatpush1.bf16.msra.mxu0 %v292
    %467 = vmatprep.subr.bf16.mxu0 0
    %468 = vmatpush2.bf16.msra.mxu0 0
    %469 = vmatprep.subr.bf16.mxu0 0
    %470 = vmatpush2.bf16.msra.mxu0 0
    %471 = vmatprep.subr.bf16.mxu0 0
    %472 = vmatpush2.bf16.msra.mxu0 0
    %473 = vmatprep.subr.bf16.mxu0 0
    %474 = vmatpush2.bf16.msra.mxu0 0
    %475 = vmatprep.subr.bf16.mxu0 0
    %476 = vmatpush2.bf16.msra.mxu0 0
    %477 = vmatprep.subr.bf16.mxu0 0
    %478 = vmatpush2.bf16.msra.mxu0 0
    %479 = vmatprep.subr.bf16.mxu0 0
    %480 = vmatpush2.bf16.msra.mxu0 0
    %481 = vmatprep.subr.bf16.mxu0 0
    %482 = vmatpush2.bf16.msra.mxu0 0
    %483 = vmatprep.mubr.bf16.mxu0 0
    %484 = vmatmul.mubr.bf16.gmra.mxu0 %v194
    %v485 = vpop.f32.mrf.mxu0
    %v486 = vadd.f32 %v158, %v485
    %v487 = vpop.f32.mrf.mxu0
    %v488 = vpop.f32.mrf.mxu0
    %v489 = vadd.f32 %v158, %v488
    %v490 = vpop.f32.mrf.mxu0
    %491 = vmatprep.mubr.bf16.mxu0 0
    %492 = vmatmul.mubr.bf16.gmra.mxu0 %v195
    %v493 = vpop.f32.mrf.mxu0
    %v494 = vadd.f32 %v158, %v493
    %v495 = vpop.f32.mrf.mxu0
    %v496 = vpop.f32.mrf.mxu0
    %v497 = vadd.f32 %v158, %v496
    %v498 = vpop.f32.mrf.mxu0
    %499 = vmatprep.mubr.bf16.mxu0 0
    %500 = vmatmul.mubr.bf16.gmra.mxu0 %v196
    %v501 = vpop.f32.mrf.mxu0
    %v502 = vadd.f32 %v158, %v501
    %v503 = vpop.f32.mrf.mxu0
    %v504 = vpop.f32.mrf.mxu0
    %v505 = vadd.f32 %v158, %v504
    %v506 = vpop.f32.mrf.mxu0
    %507 = vmatprep.mubr.bf16.mxu0 0
    %508 = vmatmul.mubr.bf16.gmra.mxu0 %v197
    %v509 = vpop.f32.mrf.mxu0
    %v510 = vadd.f32 %v158, %v509
    %v511 = vpop.f32.mrf.mxu0
    %v512 = vpop.f32.mrf.mxu0
    %v513 = vadd.f32 %v158, %v512
    %v514 = vpop.f32.mrf.mxu0
    %515 = vmatprep.mubr.bf16.mxu0 0
    %516 = vmatmul.mubr.bf16.gmra.mxu0 %v198
    %v517 = vpop.f32.mrf.mxu0
    %v518 = vadd.f32 %v158, %v517
    %v519 = vpop.f32.mrf.mxu0
    %v520 = vpop.f32.mrf.mxu0
    %v521 = vadd.f32 %v158, %v520
    %v522 = vpop.f32.mrf.mxu0
    %523 = vmatprep.mubr.bf16.mxu0 0
    %524 = vmatmul.mubr.bf16.gmra.mxu0 %v199
    %v525 = vpop.f32.mrf.mxu0
    %v526 = vadd.f32 %v158, %v525
    %v527 = vpop.f32.mrf.mxu0
    %v528 = vpop.f32.mrf.mxu0
    %v529 = vadd.f32 %v158, %v528
    %v530 = vpop.f32.mrf.mxu0
    %531 = vmatprep.mubr.bf16.mxu0 0
    %532 = vmatmul.mubr.bf16.gmra.mxu0 %v200
    %v533 = vpop.f32.mrf.mxu0
    %v534 = vadd.f32 %v158, %v533
    %v535 = vpop.f32.mrf.mxu0
    %v536 = vpop.f32.mrf.mxu0
    %v537 = vadd.f32 %v158, %v536
    %v538 = vpop.f32.mrf.mxu0
    %539 = vmatprep.mubr.bf16.mxu0 0
    %540 = vmatmul.mubr.bf16.gmra.mxu0 %v201
    %v541 = vpop.f32.mrf.mxu0
    %v542 = vadd.f32 %v158, %v541
    %v543 = vpop.f32.mrf.mxu0
    %v544 = vpop.f32.mrf.mxu0
    %v545 = vadd.f32 %v158, %v544
    %v546 = vpop.f32.mrf.mxu0
    %547 = vdwg.mxu0
    %v548 = vpack.c.bf16 %v377, %v373
    %v549 = vpack.c.bf16 %v379, %v375
    %v550 = vpack.c.bf16 %v489, %v486
    %v551 = vpack.c.bf16 %v387, %v383
    %v552 = vpack.c.bf16 %v389, %v385
    %v553 = vpack.c.bf16 %v497, %v494
    %v554 = vpack.c.bf16 %v397, %v393
    %v555 = vpack.c.bf16 %v399, %v395
    %v556 = vpack.c.bf16 %v505, %v502
    %v557 = vpack.c.bf16 %v407, %v403
    %v558 = vpack.c.bf16 %v409, %v405
    %v559 = vpack.c.bf16 %v513, %v510
    %v560 = vpack.c.bf16 %v417, %v413
    %v561 = vpack.c.bf16 %v419, %v415
    %v562 = vpack.c.bf16 %v521, %v518
    %v563 = vpack.c.bf16 %v427, %v423
    %v564 = vpack.c.bf16 %v429, %v425
    %v565 = vpack.c.bf16 %v529, %v526
    %v566 = vpack.c.bf16 %v437, %v433
    %v567 = vpack.c.bf16 %v439, %v435
    %v568 = vpack.c.bf16 %v537, %v534
    %v569 = vpack.c.bf16 %v447, %v443
    %v570 = vpack.c.bf16 %v449, %v445
    %v571 = vpack.c.bf16 %v545, %v542
    %v596 = vunpack.c.l.b16 %v548
    %v597 = vunpack.c.l.b16 %v549
    %v598 = vunpack.c.l.b16 %v550
    %v599 = vunpack.c.h.b16 %v548
    %v600 = vunpack.c.h.b16 %v549
    %v601 = vunpack.c.h.b16 %v550
    %v602 = vunpack.c.l.b16 %v551
    %v603 = vunpack.c.l.b16 %v552
    %v604 = vunpack.c.l.b16 %v553
    %v605 = vunpack.c.h.b16 %v551
    %v606 = vunpack.c.h.b16 %v552
    %v607 = vunpack.c.h.b16 %v553
    %v608 = vunpack.c.l.b16 %v554
    %v609 = vunpack.c.l.b16 %v555
    %v610 = vunpack.c.l.b16 %v556
    %v611 = vunpack.c.h.b16 %v554
    %v612 = vunpack.c.h.b16 %v555
    %v613 = vunpack.c.h.b16 %v556
    %v614 = vunpack.c.l.b16 %v557
    %v615 = vunpack.c.l.b16 %v558
    %v616 = vunpack.c.l.b16 %v559
    %v617 = vunpack.c.h.b16 %v557
    %v618 = vunpack.c.h.b16 %v558
    %v619 = vunpack.c.h.b16 %v559
    %v620 = vunpack.c.l.b16 %v560
    %v621 = vunpack.c.l.b16 %v561
    %v622 = vunpack.c.l.b16 %v562
    %v623 = vunpack.c.h.b16 %v560
    %v624 = vunpack.c.h.b16 %v561
    %v625 = vunpack.c.h.b16 %v562
    %v626 = vunpack.c.l.b16 %v563
    %v627 = vunpack.c.l.b16 %v564
    %v628 = vunpack.c.l.b16 %v565
    %v629 = vunpack.c.h.b16 %v563
    %v630 = vunpack.c.h.b16 %v564
    %v631 = vunpack.c.h.b16 %v565
    %v632 = vunpack.c.l.b16 %v566
    %v633 = vunpack.c.l.b16 %v567
    %v634 = vunpack.c.l.b16 %v568
    %v635 = vunpack.c.h.b16 %v566
    %v636 = vunpack.c.h.b16 %v567
    %v637 = vunpack.c.h.b16 %v568
    %v638 = vunpack.c.l.b16 %v569
    %v639 = vunpack.c.l.b16 %v570
    %v640 = vunpack.c.l.b16 %v571
    %v641 = vunpack.c.h.b16 %v569
    %v642 = vunpack.c.h.b16 %v570
    %v643 = vunpack.c.h.b16 %v571
    %v644 = vpack.c.b16 %v597, %v596
    %v645 = vpack.c.b16 %v598, %v598
    %v646 = vpack.c.b16 %v600, %v599
    %v647 = vpack.c.b16 %v601, %v601
    %v648 = vpack.c.b16 %v603, %v602
    %v649 = vpack.c.b16 %v604, %v604
    %v650 = vpack.c.b16 %v606, %v605
    %v651 = vpack.c.b16 %v607, %v607
    %v652 = vpack.c.b16 %v609, %v608
    %v653 = vpack.c.b16 %v610, %v610
    %v654 = vpack.c.b16 %v612, %v611
    %v655 = vpack.c.b16 %v613, %v613
    %v656 = vpack.c.b16 %v615, %v614
    %v657 = vpack.c.b16 %v616, %v616
    %v658 = vpack.c.b16 %v618, %v617
    %v659 = vpack.c.b16 %v619, %v619
    %v660 = vpack.c.b16 %v621, %v620
    %v661 = vpack.c.b16 %v622, %v622
    %v662 = vpack.c.b16 %v624, %v623
    %v663 = vpack.c.b16 %v625, %v625
    %v664 = vpack.c.b16 %v627, %v626
    %v665 = vpack.c.b16 %v628, %v628
    %v666 = vpack.c.b16 %v630, %v629
    %v667 = vpack.c.b16 %v631, %v631
    %v668 = vpack.c.b16 %v633, %v632
    %v669 = vpack.c.b16 %v634, %v634
    %v670 = vpack.c.b16 %v636, %v635
    %v671 = vpack.c.b16 %v637, %v637
    %v672 = vpack.c.b16 %v639, %v638
    %v673 = vpack.c.b16 %v640, %v640
    %v674 = vpack.c.b16 %v642, %v641
    %v675 = vpack.c.b16 %v643, %v643
    %708 = vst [vmem:[#allocation2] sm:$0xff] %v644
    %709 = vst [vmem:[#allocation2 + $0x8] sm:$0xf] %v645
    %710 = vst [vmem:[#allocation2 + $0xc] sm:$0xff] %v646
    %711 = vst [vmem:[#allocation2 + $0x14] sm:$0xf] %v647
    %712 = vst [vmem:[#allocation2 + $0x18] sm:$0xff] %v648
    %713 = vst [vmem:[#allocation2 + $0x20] sm:$0xf] %v649
    %714 = vst [vmem:[#allocation2 + $0x24] sm:$0xff] %v650
    %715 = vst [vmem:[#allocation2 + $0x2c] sm:$0xf] %v651
    %716 = vst [vmem:[#allocation2 + $0x30] sm:$0xff] %v652
    %717 = vst [vmem:[#allocation2 + $0x38] sm:$0xf] %v653
    %718 = vst [vmem:[#allocation2 + $0x3c] sm:$0xff] %v654
    %719 = vst [vmem:[#allocation2 + $0x44] sm:$0xf] %v655
    %720 = vst [vmem:[#allocation2 + $0x48] sm:$0xff] %v656
    %721 = vst [vmem:[#allocation2 + $0x50] sm:$0xf] %v657
    %722 = vst [vmem:[#allocation2 + $0x54] sm:$0xff] %v658
    %723 = vst [vmem:[#allocation2 + $0x5c] sm:$0xf] %v659
    %724 = vst [vmem:[#allocation2 + $0x60] sm:$0xff] %v660
    %725 = vst [vmem:[#allocation2 + $0x68] sm:$0xf] %v661
    %726 = vst [vmem:[#allocation2 + $0x6c] sm:$0xff] %v662
    %727 = vst [vmem:[#allocation2 + $0x74] sm:$0xf] %v663
    %728 = vst [vmem:[#allocation2 + $0x78] sm:$0xff] %v664
    %729 = vst [vmem:[#allocation2 + $0x80] sm:$0xf] %v665
    %730 = vst [vmem:[#allocation2 + $0x84] sm:$0xff] %v666
    %731 = vst [vmem:[#allocation2 + $0x8c] sm:$0xf] %v667
    %732 = vst [vmem:[#allocation2 + $0x90] sm:$0xff] %v668
    %733 = vst [vmem:[#allocation2 + $0x98] sm:$0xf] %v669
    %734 = vst [vmem:[#allocation2 + $0x9c] sm:$0xff] %v670
    %735 = vst [vmem:[#allocation2 + $0xa4] sm:$0xf] %v671
    %736 = vst [vmem:[#allocation2 + $0xa8] sm:$0xff] %v672
    %737 = vst [vmem:[#allocation2 + $0xb0] sm:$0xf] %v673
    %738 = vst [vmem:[#allocation2 + $0xb4] sm:$0xff] %v674
    %739 = vst [vmem:[#allocation2 + $0xbc] sm:$0xf] %v675
    %v740 = vld [vmem:[#allocation9] sm:$0xff]
    %v741 = vld [vmem:[#allocation9 + $0x8] sm:$0xf]
    %v742 = vld [vmem:[#allocation9 + $0xc] sm:$0xff]
    %v743 = vld [vmem:[#allocation9 + $0x14] sm:$0xf]
    %v744 = vld [vmem:[#allocation9 + $0x18] sm:$0xff]
    %v745 = vld [vmem:[#allocation9 + $0x20] sm:$0xf]
    %v746 = vld [vmem:[#allocation9 + $0x24] sm:$0xff]
    %v747 = vld [vmem:[#allocation9 + $0x2c] sm:$0xf]
    %v748 = vld [vmem:[#allocation9 + $0x30] sm:$0xff]
    %v749 = vld [vmem:[#allocation9 + $0x38] sm:$0xf]
    %v750 = vld [vmem:[#allocation9 + $0x3c] sm:$0xff]
    %v751 = vld [vmem:[#allocation9 + $0x44] sm:$0xf]
    %v752 = vld [vmem:[#allocation9 + $0x48] sm:$0xff]
    %v753 = vld [vmem:[#allocation9 + $0x50] sm:$0xf]
    %v754 = vld [vmem:[#allocation9 + $0x54] sm:$0xff]
    %v755 = vld [vmem:[#allocation9 + $0x5c] sm:$0xf]
    %v756 = vld [vmem:[#allocation9 + $0x60] sm:$0xff]
    %v757 = vld [vmem:[#allocation9 + $0x68] sm:$0xf]
    %v758 = vld [vmem:[#allocation9 + $0x6c] sm:$0xff]
    %v759 = vld [vmem:[#allocation9 + $0x74] sm:$0xf]
    %v760 = vld [vmem:[#allocation9 + $0x78] sm:$0xff]
    %v761 = vld [vmem:[#allocation9 + $0x80] sm:$0xf]
    %v762 = vld [vmem:[#allocation9 + $0x84] sm:$0xff]
    %v763 = vld [vmem:[#allocation9 + $0x8c] sm:$0xf]
    %v764 = vld [vmem:[#allocation9 + $0x90] sm:$0xff]
    %v765 = vld [vmem:[#allocation9 + $0x98] sm:$0xf]
    %v766 = vld [vmem:[#allocation9 + $0x9c] sm:$0xff]
    %v767 = vld [vmem:[#allocation9 + $0xa4] sm:$0xf]
    %v768 = vld [vmem:[#allocation9 + $0xa8] sm:$0xff]
    %v769 = vld [vmem:[#allocation9 + $0xb0] sm:$0xf]
    %v770 = vld [vmem:[#allocation9 + $0xb4] sm:$0xff]
    %v771 = vld [vmem:[#allocation9 + $0xbc] sm:$0xf]
    %v772 = vld [vmem:[%s6] sm:$0x1]
    %v774 = vlaneseq
    %v775 = vshrl.u32 %v774, 7
    %v776 = vsub.s32 0, %v775
    %v777 = vrot.slane %v772, %v776
    %v779 = vld [vmem:[%s1] sm:$0xff]
    %v780 = vld [vmem:[%s1 + $0x8] sm:$0xff]
    %s781 = smul.u32 0, 8
    %v782 = vld [vmem:[#allocation3] sm:$0xff]
    %v783 = vld [vmem:[#allocation3 + $0x8] sm:$0xff]
    %v784 = vld [vmem:[#allocation2] sm:$0xff]
    %v785 = vld [vmem:[#allocation2 + $0x8] sm:$0xf]
    %v786 = vld [vmem:[#allocation2 + $0xc] sm:$0xff]
    %v787 = vld [vmem:[#allocation2 + $0x14] sm:$0xf]
    %v788 = vunpack.c.l.bf16 %v784
    %v789 = vunpack.c.h.bf16 %v784
    %v790 = vunpack.c.l.bf16 %v785
    %v791 = vunpack.c.l.bf16 %v786
    %v792 = vunpack.c.h.bf16 %v786
    %v793 = vunpack.c.l.bf16 %v787
    %v794 = vpack.c.bf16 %v783, %v782
    %v827 = vunpack.c.l.b16 %v740
    %v828 = vunpack.c.h.b16 %v740
    %v829 = vunpack.c.l.b16 %v741
    %v830 = vunpack.c.l.b16 %v742
    %v831 = vunpack.c.h.b16 %v742
    %v832 = vunpack.c.l.b16 %v743
    %v833 = vunpack.c.l.b16 %v744
    %v834 = vunpack.c.h.b16 %v744
    %v835 = vunpack.c.l.b16 %v745
    %v836 = vunpack.c.l.b16 %v746
    %v837 = vunpack.c.h.b16 %v746
    %v838 = vunpack.c.l.b16 %v747
    %v839 = vunpack.c.l.b16 %v748
    %v840 = vunpack.c.h.b16 %v748
    %v841 = vunpack.c.l.b16 %v749
    %v842 = vunpack.c.l.b16 %v750
    %v843 = vunpack.c.h.b16 %v750
    %v844 = vunpack.c.l.b16 %v751
    %v845 = vunpack.c.l.b16 %v752
    %v846 = vunpack.c.h.b16 %v752
    %v847 = vunpack.c.l.b16 %v753
    %v848 = vunpack.c.l.b16 %v754
    %v849 = vunpack.c.h.b16 %v754
    %v850 = vunpack.c.l.b16 %v755
    %v851 = vunpack.c.l.b16 %v756
    %v852 = vunpack.c.h.b16 %v756
    %v853 = vunpack.c.l.b16 %v757
    %v854 = vunpack.c.l.b16 %v758
    %v855 = vunpack.c.h.b16 %v758
    %v856 = vunpack.c.l.b16 %v759
    %v857 = vunpack.c.l.b16 %v760
    %v858 = vunpack.c.h.b16 %v760
    %v859 = vunpack.c.l.b16 %v761
    %v860 = vunpack.c.l.b16 %v762
    %v861 = vunpack.c.h.b16 %v762
    %v862 = vunpack.c.l.b16 %v763
    %v863 = vunpack.c.l.b16 %v764
    %v864 = vunpack.c.h.b16 %v764
    %v865 = vunpack.c.l.b16 %v765
    %v866 = vunpack.c.l.b16 %v766
    %v867 = vunpack.c.h.b16 %v766
    %v868 = vunpack.c.l.b16 %v767
    %v869 = vunpack.c.l.b16 %v768
    %v870 = vunpack.c.h.b16 %v768
    %v871 = vunpack.c.l.b16 %v769
    %v872 = vunpack.c.l.b16 %v770
    %v873 = vunpack.c.h.b16 %v770
    %v874 = vunpack.c.l.b16 %v771
    %v875 = vpack.c.b16 %v830, %v827
    %v876 = vpack.c.b16 %v831, %v828
    %v877 = vpack.c.b16 %v832, %v829
    %v878 = vpack.c.b16 %v836, %v833
    %v879 = vpack.c.b16 %v837, %v834
    %v880 = vpack.c.b16 %v838, %v835
    %v881 = vpack.c.b16 %v842, %v839
    %v882 = vpack.c.b16 %v843, %v840
    %v883 = vpack.c.b16 %v844, %v841
    %v884 = vpack.c.b16 %v848, %v845
    %v885 = vpack.c.b16 %v849, %v846
    %v886 = vpack.c.b16 %v850, %v847
    %v887 = vpack.c.b16 %v854, %v851
    %v888 = vpack.c.b16 %v855, %v852
    %v889 = vpack.c.b16 %v856, %v853
    %v890 = vpack.c.b16 %v860, %v857
    %v891 = vpack.c.b16 %v861, %v858
    %v892 = vpack.c.b16 %v862, %v859
    %v893 = vpack.c.b16 %v866, %v863
    %v894 = vpack.c.b16 %v867, %v864
    %v895 = vpack.c.b16 %v868, %v865
    %v896 = vpack.c.b16 %v872, %v869
    %v897 = vpack.c.b16 %v873, %v870
    %v898 = vpack.c.b16 %v874, %v871
    %923 = vmatprep.subr.bf16.mxu0 %v897
    %924 = vmatpush1.bf16.msra.mxu0 %v896
    %925 = vmatprep.subr.bf16.mxu0 %v894
    %926 = vmatpush1.bf16.msra.mxu0 %v893
    %927 = vmatprep.subr.bf16.mxu0 %v891
    %928 = vmatpush1.bf16.msra.mxu0 %v890
    %929 = vmatprep.subr.bf16.mxu0 %v888
    %930 = vmatpush1.bf16.msra.mxu0 %v887
    %931 = vmatprep.subr.bf16.mxu0 %v885
    %932 = vmatpush1.bf16.msra.mxu0 %v884
    %933 = vmatprep.subr.bf16.mxu0 %v882
    %934 = vmatpush1.bf16.msra.mxu0 %v881
    %935 = vmatprep.subr.bf16.mxu0 %v879
    %936 = vmatpush1.bf16.msra.mxu0 %v878
    %937 = vmatprep.subr.bf16.mxu0 %v876
    %938 = vmatpush1.bf16.msra.mxu0 %v875
    %939 = vmatprep.subr.bf16.mxu0 0
    %940 = vmatpush2.bf16.msra.mxu0 0
    %941 = vmatprep.subr.bf16.mxu0 0
    %942 = vmatpush2.bf16.msra.mxu0 0
    %943 = vmatprep.subr.bf16.mxu0 0
    %944 = vmatpush2.bf16.msra.mxu0 0
    %945 = vmatprep.subr.bf16.mxu0 0
    %946 = vmatpush2.bf16.msra.mxu0 0
    %947 = vmatprep.subr.bf16.mxu0 0
    %948 = vmatpush2.bf16.msra.mxu0 0
    %949 = vmatprep.subr.bf16.mxu0 0
    %950 = vmatpush2.bf16.msra.mxu0 0
    %951 = vmatprep.subr.bf16.mxu0 0
    %952 = vmatpush2.bf16.msra.mxu0 0
    %953 = vmatprep.subr.bf16.mxu0 0
    %954 = vmatpush2.bf16.msra.mxu0 0
    %955 = vmatprep.mubr.bf16.mxu0 0
    %956 = vmatmul.mubr.bf16.gmra.mxu0 %v794
    %v957 = vpop.f32.mrf.mxu0
    %v958 = vadd.f32 0.0, %v957
    %v959 = vpop.f32.mrf.mxu0
    %v960 = vadd.f32 0.0, %v959
    %v961 = vpop.f32.mrf.mxu0
    %v962 = vadd.f32 0.0, %v961
    %v963 = vpop.f32.mrf.mxu0
    %v964 = vadd.f32 0.0, %v963
    %965 = vdwg.mxu0
    %966 = vmatprep.subr.bf16.mxu0 0
    %967 = vmatpush1.bf16.msra.mxu0 %v898
    %968 = vmatprep.subr.bf16.mxu0 0
    %969 = vmatpush1.bf16.msra.mxu0 %v895
    %970 = vmatprep.subr.bf16.mxu0 0
    %971 = vmatpush1.bf16.msra.mxu0 %v892
    %972 = vmatprep.subr.bf16.mxu0 0
    %973 = vmatpush1.bf16.msra.mxu0 %v889
    %974 = vmatprep.subr.bf16.mxu0 0
    %975 = vmatpush1.bf16.msra.mxu0 %v886
    %976 = vmatprep.subr.bf16.mxu0 0
    %977 = vmatpush1.bf16.msra.mxu0 %v883
    %978 = vmatprep.subr.bf16.mxu0 0
    %979 = vmatpush1.bf16.msra.mxu0 %v880
    %980 = vmatprep.subr.bf16.mxu0 0
    %981 = vmatpush1.bf16.msra.mxu0 %v877
    %982 = vmatprep.subr.bf16.mxu0 0
    %983 = vmatpush2.bf16.msra.mxu0 0
    %984 = vmatprep.subr.bf16.mxu0 0
    %985 = vmatpush2.bf16.msra.mxu0 0
    %986 = vmatprep.subr.bf16.mxu0 0
    %987 = vmatpush2.bf16.msra.mxu0 0
    %988 = vmatprep.subr.bf16.mxu0 0
    %989 = vmatpush2.bf16.msra.mxu0 0
    %990 = vmatprep.subr.bf16.mxu0 0
    %991 = vmatpush2.bf16.msra.mxu0 0
    %992 = vmatprep.subr.bf16.mxu0 0
    %993 = vmatpush2.bf16.msra.mxu0 0
    %994 = vmatprep.subr.bf16.mxu0 0
    %995 = vmatpush2.bf16.msra.mxu0 0
    %996 = vmatprep.subr.bf16.mxu0 0
    %997 = vmatpush2.bf16.msra.mxu0 0
    %998 = vmatprep.mubr.bf16.mxu0 0
    %999 = vmatmul.mubr.bf16.gmra.mxu0 %v794
    %v1000 = vpop.f32.mrf.mxu0
    %v1001 = vadd.f32 0.0, %v1000
    %v1002 = vpop.f32.mrf.mxu0
    %v1003 = vpop.f32.mrf.mxu0
    %v1004 = vadd.f32 0.0, %v1003
    %v1005 = vpop.f32.mrf.mxu0
    %1006 = vdwg.mxu0
    %v1007 = vadd.f32 %v788, %v958
    %v1008 = vadd.f32 %v789, %v960
    %v1009 = vadd.f32 %v791, %v962
    %v1010 = vadd.f32 %v792, %v964
    %v1011 = vxor.u32 %v1007, 2147483648
    %v1012 = vxor.u32 %v1008, 2147483648
    %v1013 = vxor.u32 %v1009, 2147483648
    %v1014 = vxor.u32 %v1010, 2147483648
    %v1015 = vmul.f32 %v1011, 1.442695
    %v1016 = vpow.pop %v1015
    %v1017 = vmul.f32 %v1012, 1.442695
    %v1018 = vpow.pop %v1017
    %v1019 = vmul.f32 %v1013, 1.442695
    %v1020 = vpow.pop %v1019
    %v1021 = vmul.f32 %v1014, 1.442695
    %v1022 = vpow.pop %v1021
    %v1023 = vadd.f32 %v1016, 1.0
    %v1024 = vadd.f32 %v1018, 1.0
    %v1025 = vadd.f32 %v1020, 1.0
    %v1026 = vadd.f32 %v1022, 1.0
    %v1027 = vrcp.pop %v1023
    %v1028 = vmul.f32 1.0, %v1027
    %v1029 = vrcp.pop %v1024
    %v1030 = vmul.f32 1.0, %v1029
    %v1031 = vrcp.pop %v1025
    %v1032 = vmul.f32 1.0, %v1031
    %v1033 = vrcp.pop %v1026
    %v1034 = vmul.f32 1.0, %v1033
    %v1035 = vadd.f32 %v1001, %v777
    %v1036 = vadd.f32 %v1004, %v777
    %v1037 = vmul.f32 %v1028, %v1035
    %v1038 = vmul.f32 %v1032, %v1036
    %v1039 = vadd.f32 %v790, %v1037
    %v1040 = vadd.f32 %v793, %v1038
    %v1041 = vtanh.pop %v1039
    %v1042 = vtanh.pop %v1040
    %v1043 = vsub.f32 %v782, %v1041
    %v1044 = vsub.f32 %v783, %v1042
    %v1045 = vmul.f32 %v1030, %v1043
    %v1046 = vmul.f32 %v1034, %v1044
    %v1047 = vadd.f32 %v1041, %v1045
    %v1048 = vadd.f32 %v1042, %v1046
    %v1049 = vstv %s781
    %vm1050 = vcmp.lt.s32.totalorder %v1049, %v779
    %vm1051 = vcmp.lt.s32.totalorder %v1049, %v780
    %v1052 = vsel %vm1050, 1, 0
    %v1053 = vsel %vm1051, 1, 0
    %1054 = vset.pattern.permute.xlu0 0
    %1055 = vperm.xlu0 %1054, %v1052
    %v1056 = vpop.permute.xlu0 %1055
    %1057 = vset.pattern.permute.xlu0 0
    %1058 = vperm.xlu0 %1057, %v1053
    %v1059 = vpop.permute.xlu0 %1058
    %vm1060 = vcmp.eq.s32.totalorder %v1056, 1
    %vm1061 = vcmp.eq.s32.totalorder %v1059, 1
    %v1062 = vsel %vm1060, %v1047, %v782
    %v1063 = vsel %vm1061, %v1048, %v783
    %s1064 = scalar_lea.vmem [#allocation2], 24
    %v1065 = vld [vmem:[%s1064] sm:$0xff]
    %v1066 = vld [vmem:[%s1064 + $0x8] sm:$0xf]
    %v1067 = vld [vmem:[%s1064 + $0xc] sm:$0xff]
    %v1068 = vld [vmem:[%s1064 + $0x14] sm:$0xf]
    %v1069 = vunpack.c.l.bf16 %v1065
    %v1070 = vunpack.c.h.bf16 %v1065
    %v1071 = vunpack.c.l.bf16 %v1066
    %v1072 = vunpack.c.l.bf16 %v1067
    %v1073 = vunpack.c.h.bf16 %v1067
    %v1074 = vunpack.c.l.bf16 %v1068
    %v1075 = vpack.c.bf16 %v1063, %v1062
    %1076 = vmatprep.subr.bf16.mxu0 %v897
    %1077 = vmatpush1.bf16.msra.mxu0 %v896
    %1078 = vmatprep.subr.bf16.mxu0 %v894
    %1079 = vmatpush1.bf16.msra.mxu0 %v893
    %1080 = vmatprep.subr.bf16.mxu0 %v891
    %1081 = vmatpush1.bf16.msra.mxu0 %v890
    %1082 = vmatprep.subr.bf16.mxu0 %v888
    %1083 = vmatpush1.bf16.msra.mxu0 %v887
    %1084 = vmatprep.subr.bf16.mxu0 %v885
    %1085 = vmatpush1.bf16.msra.mxu0 %v884
    %1086 = vmatprep.subr.bf16.mxu0 %v882
    %1087 = vmatpush1.bf16.msra.mxu0 %v881
    %1088 = vmatprep.subr.bf16.mxu0 %v879
    %1089 = vmatpush1.bf16.msra.mxu0 %v878
    %1090 = vmatprep.subr.bf16.mxu0 %v876
    %1091 = vmatpush1.bf16.msra.mxu0 %v875
    %1092 = vmatprep.subr.bf16.mxu0 0
    %1093 = vmatpush2.bf16.msra.mxu0 0
    %1094 = vmatprep.subr.bf16.mxu0 0
    %1095 = vmatpush2.bf16.msra.mxu0 0
    %1096 = vmatprep.subr.bf16.mxu0 0
    %1097 = vmatpush2.bf16.msra.mxu0 0
    %1098 = vmatprep.subr.bf16.mxu0 0
    %1099 = vmatpush2.bf16.msra.mxu0 0
    %1100 = vmatprep.subr.bf16.mxu0 0
    %1101 = vmatpush2.bf16.msra.mxu0 0
    %1102 = vmatprep.subr.bf16.mxu0 0
    %1103 = vmatpush2.bf16.msra.mxu0 0
    %1104 = vmatprep.subr.bf16.mxu0 0
    %1105 = vmatpush2.bf16.msra.mxu0 0
    %1106 = vmatprep.subr.bf16.mxu0 0
    %1107 = vmatpush2.bf16.msra.mxu0 0
    %1108 = vmatprep.mubr.bf16.mxu0 0
    %1109 = vmatmul.mubr.bf16.gmra.mxu0 %v1075
    %v1110 = vpop.f32.mrf.mxu0
    %v1111 = vadd.f32 0.0, %v1110
    %v1112 = vpop.f32.mrf.mxu0
    %v1113 = vadd.f32 0.0, %v1112
    %v1114 = vpop.f32.mrf.mxu0
    %v1115 = vadd.f32 0.0, %v1114
    %v1116 = vpop.f32.mrf.mxu0
    %v1117 = vadd.f32 0.0, %v1116
    %1118 = vdwg.mxu0
    %1119 = vmatprep.subr.bf16.mxu0 0
    %1120 = vmatpush1.bf16.msra.mxu0 %v898
    %1121 = vmatprep.subr.bf16.mxu0 0
    %1122 = vmatpush1.bf16.msra.mxu0 %v895
    %1123 = vmatprep.subr.bf16.mxu0 0
    %1124 = vmatpush1.bf16.msra.mxu0 %v892
    %1125 = vmatprep.subr.bf16.mxu0 0
    %1126 = vmatpush1.bf16.msra.mxu0 %v889
    %1127 = vmatprep.subr.bf16.mxu0 0
    %1128 = vmatpush1.bf16.msra.mxu0 %v886
    %1129 = vmatprep.subr.bf16.mxu0 0
    %1130 = vmatpush1.bf16.msra.mxu0 %v883
    %1131 = vmatprep.subr.bf16.mxu0 0
    %1132 = vmatpush1.bf16.msra.mxu0 %v880
    %1133 = vmatprep.subr.bf16.mxu0 0
    %1134 = vmatpush1.bf16.msra.mxu0 %v877
    %1135 = vmatprep.subr.bf16.mxu0 0
    %1136 = vmatpush2.bf16.msra.mxu0 0
    %1137 = vmatprep.subr.bf16.mxu0 0
    %1138 = vmatpush2.bf16.msra.mxu0 0
    %1139 = vmatprep.subr.bf16.mxu0 0
    %1140 = vmatpush2.bf16.msra.mxu0 0
    %1141 = vmatprep.subr.bf16.mxu0 0
    %1142 = vmatpush2.bf16.msra.mxu0 0
    %1143 = vmatprep.subr.bf16.mxu0 0
    %1144 = vmatpush2.bf16.msra.mxu0 0
    %1145 = vmatprep.subr.bf16.mxu0 0
    %1146 = vmatpush2.bf16.msra.mxu0 0
    %1147 = vmatprep.subr.bf16.mxu0 0
    %1148 = vmatpush2.bf16.msra.mxu0 0
    %1149 = vmatprep.subr.bf16.mxu0 0
    %1150 = vmatpush2.bf16.msra.mxu0 0
    %1151 = vmatprep.mubr.bf16.mxu0 0
    %1152 = vmatmul.mubr.bf16.gmra.mxu0 %v1075
    %v1153 = vpop.f32.mrf.mxu0
    %v1154 = vadd.f32 0.0, %v1153
    %v1155 = vpop.f32.mrf.mxu0
    %v1156 = vpop.f32.mrf.mxu0
    %v1157 = vadd.f32 0.0, %v1156
    %v1158 = vpop.f32.mrf.mxu0
    %1159 = vdwg.mxu0
    %v1160 = vadd.f32 %v1069, %v1111
    %v1161 = vadd.f32 %v1070, %v1113
    %v1162 = vadd.f32 %v1072, %v1115
    %v1163 = vadd.f32 %v1073, %v1117
    %v1164 = vxor.u32 %v1160, 2147483648
    %v1165 = vxor.u32 %v1161, 2147483648
    %v1166 = vxor.u32 %v1162, 2147483648
    %v1167 = vxor.u32 %v1163, 2147483648
    %v1168 = vmul.f32 %v1164, 1.442695
    %v1169 = vpow.pop %v1168
    %v1170 = vmul.f32 %v1165, 1.442695
    %v1171 = vpow.pop %v1170
    %v1172 = vmul.f32 %v1166, 1.442695
    %v1173 = vpow.pop %v1172
    %v1174 = vmul.f32 %v1167, 1.442695
    %v1175 = vpow.pop %v1174
    %v1176 = vadd.f32 %v1169, 1.0
    %v1177 = vadd.f32 %v1171, 1.0
    %v1178 = vadd.f32 %v1173, 1.0
    %v1179 = vadd.f32 %v1175, 1.0
    %v1180 = vrcp.pop %v1176
    %v1181 = vmul.f32 1.0, %v1180
    %v1182 = vrcp.pop %v1177
    %v1183 = vmul.f32 1.0, %v1182
    %v1184 = vrcp.pop %v1178
    %v1185 = vmul.f32 1.0, %v1184
    %v1186 = vrcp.pop %v1179
    %v1187 = vmul.f32 1.0, %v1186
    %v1188 = vadd.f32 %v1154, %v777
    %v1189 = vadd.f32 %v1157, %v777
    %v1190 = vmul.f32 %v1181, %v1188
    %v1191 = vmul.f32 %v1185, %v1189
    %v1192 = vadd.f32 %v1071, %v1190
    %v1193 = vadd.f32 %v1074, %v1191
    %v1194 = vtanh.pop %v1192
    %v1195 = vtanh.pop %v1193
    %v1196 = vsub.f32 %v1062, %v1194
    %v1197 = vsub.f32 %v1063, %v1195
    %v1198 = vmul.f32 %v1183, %v1196
    %v1199 = vmul.f32 %v1187, %v1197
    %v1200 = vadd.f32 %v1194, %v1198
    %v1201 = vadd.f32 %v1195, %v1199
    %s1202 = sadd.s32 %s781, 1
    %v1203 = vstv %s1202
    %vm1204 = vcmp.lt.s32.totalorder %v1203, %v779
    %vm1205 = vcmp.lt.s32.totalorder %v1203, %v780
    %v1206 = vsel %vm1204, 1, 0
    %v1207 = vsel %vm1205, 1, 0
    %1208 = vset.pattern.permute.xlu0 0
    %1209 = vperm.xlu0 %1208, %v1206
    %v1210 = vpop.permute.xlu0 %1209
    %1211 = vset.pattern.permute.xlu0 0
    %1212 = vperm.xlu0 %1211, %v1207
    %v1213 = vpop.permute.xlu0 %1212
    %vm1214 = vcmp.eq.s32.totalorder %v1210, 1
    %vm1215 = vcmp.eq.s32.totalorder %v1213, 1
    %v1216 = vsel %vm1214, %v1200, %v1062
    %v1217 = vsel %vm1215, %v1201, %v1063
    %s1218 = scalar_lea.vmem [#allocation2], 48
    %v1219 = vld [vmem:[%s1218] sm:$0xff]
    %v1220 = vld [vmem:[%s1218 + $0x8] sm:$0xf]
    %v1221 = vld [vmem:[%s1218 + $0xc] sm:$0xff]
    %v1222 = vld [vmem:[%s1218 + $0x14] sm:$0xf]
    %v1223 = vunpack.c.l.bf16 %v1219
    %v1224 = vunpack.c.h.bf16 %v1219
    %v1225 = vunpack.c.l.bf16 %v1220
    %v1226 = vunpack.c.l.bf16 %v1221
    %v1227 = vunpack.c.h.bf16 %v1221
    %v1228 = vunpack.c.l.bf16 %v1222
    %v1229 = vpack.c.bf16 %v1217, %v1216
    %1230 = vmatprep.subr.bf16.mxu0 %v897
    %1231 = vmatpush1.bf16.msra.mxu0 %v896
    %1232 = vmatprep.subr.bf16.mxu0 %v894
    %1233 = vmatpush1.bf16.msra.mxu0 %v893
    %1234 = vmatprep.subr.bf16.mxu0 %v891
    %1235 = vmatpush1.bf16.msra.mxu0 %v890
    %1236 = vmatprep.subr.bf16.mxu0 %v888
    %1237 = vmatpush1.bf16.msra.mxu0 %v887
    %1238 = vmatprep.subr.bf16.mxu0 %v885
    %1239 = vmatpush1.bf16.msra.mxu0 %v884
    %1240 = vmatprep.subr.bf16.mxu0 %v882
    %1241 = vmatpush1.bf16.msra.mxu0 %v881
    %1242 = vmatprep.subr.bf16.mxu0 %v879
    %1243 = vmatpush1.bf16.msra.mxu0 %v878
    %1244 = vmatprep.subr.bf16.mxu0 %v876
    %1245 = vmatpush1.bf16.msra.mxu0 %v875
    %1246 = vmatprep.subr.bf16.mxu0 0
    %1247 = vmatpush2.bf16.msra.mxu0 0
    %1248 = vmatprep.subr.bf16.mxu0 0
    %1249 = vmatpush2.bf16.msra.mxu0 0
    %1250 = vmatprep.subr.bf16.mxu0 0
    %1251 = vmatpush2.bf16.msra.mxu0 0
    %1252 = vmatprep.subr.bf16.mxu0 0
    %1253 = vmatpush2.bf16.msra.mxu0 0
    %1254 = vmatprep.subr.bf16.mxu0 0
    %1255 = vmatpush2.bf16.msra.mxu0 0
    %1256 = vmatprep.subr.bf16.mxu0 0
    %1257 = vmatpush2.bf16.msra.mxu0 0
    %1258 = vmatprep.subr.bf16.mxu0 0
    %1259 = vmatpush2.bf16.msra.mxu0 0
    %1260 = vmatprep.subr.bf16.mxu0 0
    %1261 = vmatpush2.bf16.msra.mxu0 0
    %1262 = vmatprep.mubr.bf16.mxu0 0
    %1263 = vmatmul.mubr.bf16.gmra.mxu0 %v1229
    %v1264 = vpop.f32.mrf.mxu0
    %v1265 = vadd.f32 0.0, %v1264
    %v1266 = vpop.f32.mrf.mxu0
    %v1267 = vadd.f32 0.0, %v1266
    %v1268 = vpop.f32.mrf.mxu0
    %v1269 = vadd.f32 0.0, %v1268
    %v1270 = vpop.f32.mrf.mxu0
    %v1271 = vadd.f32 0.0, %v1270
    %1272 = vdwg.mxu0
    %1273 = vmatprep.subr.bf16.mxu0 0
    %1274 = vmatpush1.bf16.msra.mxu0 %v898
    %1275 = vmatprep.subr.bf16.mxu0 0
    %1276 = vmatpush1.bf16.msra.mxu0 %v895
    %1277 = vmatprep.subr.bf16.mxu0 0
    %1278 = vmatpush1.bf16.msra.mxu0 %v892
    %1279 = vmatprep.subr.bf16.mxu0 0
    %1280 = vmatpush1.bf16.msra.mxu0 %v889
    %1281 = vmatprep.subr.bf16.mxu0 0
    %1282 = vmatpush1.bf16.msra.mxu0 %v886
    %1283 = vmatprep.subr.bf16.mxu0 0
    %1284 = vmatpush1.bf16.msra.mxu0 %v883
    %1285 = vmatprep.subr.bf16.mxu0 0
    %1286 = vmatpush1.bf16.msra.mxu0 %v880
    %1287 = vmatprep.subr.bf16.mxu0 0
    %1288 = vmatpush1.bf16.msra.mxu0 %v877
    %1289 = vmatprep.subr.bf16.mxu0 0
    %1290 = vmatpush2.bf16.msra.mxu0 0
    %1291 = vmatprep.subr.bf16.mxu0 0
    %1292 = vmatpush2.bf16.msra.mxu0 0
    %1293 = vmatprep.subr.bf16.mxu0 0
    %1294 = vmatpush2.bf16.msra.mxu0 0
    %1295 = vmatprep.subr.bf16.mxu0 0
    %1296 = vmatpush2.bf16.msra.mxu0 0
    %1297 = vmatprep.subr.bf16.mxu0 0
    %1298 = vmatpush2.bf16.msra.mxu0 0
    %1299 = vmatprep.subr.bf16.mxu0 0
    %1300 = vmatpush2.bf16.msra.mxu0 0
    %1301 = vmatprep.subr.bf16.mxu0 0
    %1302 = vmatpush2.bf16.msra.mxu0 0
    %1303 = vmatprep.subr.bf16.mxu0 0
    %1304 = vmatpush2.bf16.msra.mxu0 0
    %1305 = vmatprep.mubr.bf16.mxu0 0
    %1306 = vmatmul.mubr.bf16.gmra.mxu0 %v1229
    %v1307 = vpop.f32.mrf.mxu0
    %v1308 = vadd.f32 0.0, %v1307
    %v1309 = vpop.f32.mrf.mxu0
    %v1310 = vpop.f32.mrf.mxu0
    %v1311 = vadd.f32 0.0, %v1310
    %v1312 = vpop.f32.mrf.mxu0
    %1313 = vdwg.mxu0
    %v1314 = vadd.f32 %v1223, %v1265
    %v1315 = vadd.f32 %v1224, %v1267
    %v1316 = vadd.f32 %v1226, %v1269
    %v1317 = vadd.f32 %v1227, %v1271
    %v1318 = vxor.u32 %v1314, 2147483648
    %v1319 = vxor.u32 %v1315, 2147483648
    %v1320 = vxor.u32 %v1316, 2147483648
    %v1321 = vxor.u32 %v1317, 2147483648
    %v1322 = vmul.f32 %v1318, 1.442695
    %v1323 = vpow.pop %v1322
    %v1324 = vmul.f32 %v1319, 1.442695
    %v1325 = vpow.pop %v1324
    %v1326 = vmul.f32 %v1320, 1.442695
    %v1327 = vpow.pop %v1326
    %v1328 = vmul.f32 %v1321, 1.442695
    %v1329 = vpow.pop %v1328
    %v1330 = vadd.f32 %v1323, 1.0
    %v1331 = vadd.f32 %v1325, 1.0
    %v1332 = vadd.f32 %v1327, 1.0
    %v1333 = vadd.f32 %v1329, 1.0
    %v1334 = vrcp.pop %v1330
    %v1335 = vmul.f32 1.0, %v1334
    %v1336 = vrcp.pop %v1331
    %v1337 = vmul.f32 1.0, %v1336
    %v1338 = vrcp.pop %v1332
    %v1339 = vmul.f32 1.0, %v1338
    %v1340 = vrcp.pop %v1333
    %v1341 = vmul.f32 1.0, %v1340
    %v1342 = vadd.f32 %v1308, %v777
    %v1343 = vadd.f32 %v1311, %v777
    %v1344 = vmul.f32 %v1335, %v1342
    %v1345 = vmul.f32 %v1339, %v1343
    %v1346 = vadd.f32 %v1225, %v1344
    %v1347 = vadd.f32 %v1228, %v1345
    %v1348 = vtanh.pop %v1346
    %v1349 = vtanh.pop %v1347
    %v1350 = vsub.f32 %v1216, %v1348
    %v1351 = vsub.f32 %v1217, %v1349
    %v1352 = vmul.f32 %v1337, %v1350
    %v1353 = vmul.f32 %v1341, %v1351
    %v1354 = vadd.f32 %v1348, %v1352
    %v1355 = vadd.f32 %v1349, %v1353
    %s1356 = sadd.s32 %s781, 2
    %v1357 = vstv %s1356
    %vm1358 = vcmp.lt.s32.totalorder %v1357, %v779
    %vm1359 = vcmp.lt.s32.totalorder %v1357, %v780
    %v1360 = vsel %vm1358, 1, 0
    %v1361 = vsel %vm1359, 1, 0
    %1362 = vset.pattern.permute.xlu0 0
    %1363 = vperm.xlu0 %1362, %v1360
    %v1364 = vpop.permute.xlu0 %1363
    %1365 = vset.pattern.permute.xlu0 0
    %1366 = vperm.xlu0 %1365, %v1361
    %v1367 = vpop.permute.xlu0 %1366
    %vm1368 = vcmp.eq.s32.totalorder %v1364, 1
    %vm1369 = vcmp.eq.s32.totalorder %v1367, 1
    %v1370 = vsel %vm1368, %v1354, %v1216
    %v1371 = vsel %vm1369, %v1355, %v1217
    %s1372 = scalar_lea.vmem [#allocation2], 72
    %v1373 = vld [vmem:[%s1372] sm:$0xff]
    %v1374 = vld [vmem:[%s1372 + $0x8] sm:$0xf]
    %v1375 = vld [vmem:[%s1372 + $0xc] sm:$0xff]
    %v1376 = vld [vmem:[%s1372 + $0x14] sm:$0xf]
    %v1377 = vunpack.c.l.bf16 %v1373
    %v1378 = vunpack.c.h.bf16 %v1373
    %v1379 = vunpack.c.l.bf16 %v1374
    %v1380 = vunpack.c.l.bf16 %v1375
    %v1381 = vunpack.c.h.bf16 %v1375
    %v1382 = vunpack.c.l.bf16 %v1376
    %v1383 = vpack.c.bf16 %v1371, %v1370
    %1384 = vmatprep.subr.bf16.mxu0 %v897
    %1385 = vmatpush1.bf16.msra.mxu0 %v896
    %1386 = vmatprep.subr.bf16.mxu0 %v894
    %1387 = vmatpush1.bf16.msra.mxu0 %v893
    %1388 = vmatprep.subr.bf16.mxu0 %v891
    %1389 = vmatpush1.bf16.msra.mxu0 %v890
    %1390 = vmatprep.subr.bf16.mxu0 %v888
    %1391 = vmatpush1.bf16.msra.mxu0 %v887
    %1392 = vmatprep.subr.bf16.mxu0 %v885
    %1393 = vmatpush1.bf16.msra.mxu0 %v884
    %1394 = vmatprep.subr.bf16.mxu0 %v882
    %1395 = vmatpush1.bf16.msra.mxu0 %v881
    %1396 = vmatprep.subr.bf16.mxu0 %v879
    %1397 = vmatpush1.bf16.msra.mxu0 %v878
    %1398 = vmatprep.subr.bf16.mxu0 %v876
    %1399 = vmatpush1.bf16.msra.mxu0 %v875
    %1400 = vmatprep.subr.bf16.mxu0 0
    %1401 = vmatpush2.bf16.msra.mxu0 0
    %1402 = vmatprep.subr.bf16.mxu0 0
    %1403 = vmatpush2.bf16.msra.mxu0 0
    %1404 = vmatprep.subr.bf16.mxu0 0
    %1405 = vmatpush2.bf16.msra.mxu0 0
    %1406 = vmatprep.subr.bf16.mxu0 0
    %1407 = vmatpush2.bf16.msra.mxu0 0
    %1408 = vmatprep.subr.bf16.mxu0 0
    %1409 = vmatpush2.bf16.msra.mxu0 0
    %1410 = vmatprep.subr.bf16.mxu0 0
    %1411 = vmatpush2.bf16.msra.mxu0 0
    %1412 = vmatprep.subr.bf16.mxu0 0
    %1413 = vmatpush2.bf16.msra.mxu0 0
    %1414 = vmatprep.subr.bf16.mxu0 0
    %1415 = vmatpush2.bf16.msra.mxu0 0
    %1416 = vmatprep.mubr.bf16.mxu0 0
    %1417 = vmatmul.mubr.bf16.gmra.mxu0 %v1383
    %v1418 = vpop.f32.mrf.mxu0
    %v1419 = vadd.f32 0.0, %v1418
    %v1420 = vpop.f32.mrf.mxu0
    %v1421 = vadd.f32 0.0, %v1420
    %v1422 = vpop.f32.mrf.mxu0
    %v1423 = vadd.f32 0.0, %v1422
    %v1424 = vpop.f32.mrf.mxu0
    %v1425 = vadd.f32 0.0, %v1424
    %1426 = vdwg.mxu0
    %1427 = vmatprep.subr.bf16.mxu0 0
    %1428 = vmatpush1.bf16.msra.mxu0 %v898
    %1429 = vmatprep.subr.bf16.mxu0 0
    %1430 = vmatpush1.bf16.msra.mxu0 %v895
    %1431 = vmatprep.subr.bf16.mxu0 0
    %1432 = vmatpush1.bf16.msra.mxu0 %v892
    %1433 = vmatprep.subr.bf16.mxu0 0
    %1434 = vmatpush1.bf16.msra.mxu0 %v889
    %1435 = vmatprep.subr.bf16.mxu0 0
    %1436 = vmatpush1.bf16.msra.mxu0 %v886
    %1437 = vmatprep.subr.bf16.mxu0 0
    %1438 = vmatpush1.bf16.msra.mxu0 %v883
    %1439 = vmatprep.subr.bf16.mxu0 0
    %1440 = vmatpush1.bf16.msra.mxu0 %v880
    %1441 = vmatprep.subr.bf16.mxu0 0
    %1442 = vmatpush1.bf16.msra.mxu0 %v877
    %1443 = vmatprep.subr.bf16.mxu0 0
    %1444 = vmatpush2.bf16.msra.mxu0 0
    %1445 = vmatprep.subr.bf16.mxu0 0
    %1446 = vmatpush2.bf16.msra.mxu0 0
    %1447 = vmatprep.subr.bf16.mxu0 0
    %1448 = vmatpush2.bf16.msra.mxu0 0
    %1449 = vmatprep.subr.bf16.mxu0 0
    %1450 = vmatpush2.bf16.msra.mxu0 0
    %1451 = vmatprep.subr.bf16.mxu0 0
    %1452 = vmatpush2.bf16.msra.mxu0 0
    %1453 = vmatprep.subr.bf16.mxu0 0
    %1454 = vmatpush2.bf16.msra.mxu0 0
    %1455 = vmatprep.subr.bf16.mxu0 0
    %1456 = vmatpush2.bf16.msra.mxu0 0
    %1457 = vmatprep.subr.bf16.mxu0 0
    %1458 = vmatpush2.bf16.msra.mxu0 0
    %1459 = vmatprep.mubr.bf16.mxu0 0
    %1460 = vmatmul.mubr.bf16.gmra.mxu0 %v1383
    %v1461 = vpop.f32.mrf.mxu0
    %v1462 = vadd.f32 0.0, %v1461
    %v1463 = vpop.f32.mrf.mxu0
    %v1464 = vpop.f32.mrf.mxu0
    %v1465 = vadd.f32 0.0, %v1464
    %v1466 = vpop.f32.mrf.mxu0
    %1467 = vdwg.mxu0
    %v1468 = vadd.f32 %v1377, %v1419
    %v1469 = vadd.f32 %v1378, %v1421
    %v1470 = vadd.f32 %v1380, %v1423
    %v1471 = vadd.f32 %v1381, %v1425
    %v1472 = vxor.u32 %v1468, 2147483648
    %v1473 = vxor.u32 %v1469, 2147483648
    %v1474 = vxor.u32 %v1470, 2147483648
    %v1475 = vxor.u32 %v1471, 2147483648
    %v1476 = vmul.f32 %v1472, 1.442695
    %v1477 = vpow.pop %v1476
    %v1478 = vmul.f32 %v1473, 1.442695
    %v1479 = vpow.pop %v1478
    %v1480 = vmul.f32 %v1474, 1.442695
    %v1481 = vpow.pop %v1480
    %v1482 = vmul.f32 %v1475, 1.442695
    %v1483 = vpow.pop %v1482
    %v1484 = vadd.f32 %v1477, 1.0
    %v1485 = vadd.f32 %v1479, 1.0
    %v1486 = vadd.f32 %v1481, 1.0
    %v1487 = vadd.f32 %v1483, 1.0
    %v1488 = vrcp.pop %v1484
    %v1489 = vmul.f32 1.0, %v1488
    %v1490 = vrcp.pop %v1485
    %v1491 = vmul.f32 1.0, %v1490
    %v1492 = vrcp.pop %v1486
    %v1493 = vmul.f32 1.0, %v1492
    %v1494 = vrcp.pop %v1487
    %v1495 = vmul.f32 1.0, %v1494
    %v1496 = vadd.f32 %v1462, %v777
    %v1497 = vadd.f32 %v1465, %v777
    %v1498 = vmul.f32 %v1489, %v1496
    %v1499 = vmul.f32 %v1493, %v1497
    %v1500 = vadd.f32 %v1379, %v1498
    %v1501 = vadd.f32 %v1382, %v1499
    %v1502 = vtanh.pop %v1500
    %v1503 = vtanh.pop %v1501
    %v1504 = vsub.f32 %v1370, %v1502
    %v1505 = vsub.f32 %v1371, %v1503
    %v1506 = vmul.f32 %v1491, %v1504
    %v1507 = vmul.f32 %v1495, %v1505
    %v1508 = vadd.f32 %v1502, %v1506
    %v1509 = vadd.f32 %v1503, %v1507
    %s1510 = sadd.s32 %s781, 3
    %v1511 = vstv %s1510
    %vm1512 = vcmp.lt.s32.totalorder %v1511, %v779
    %vm1513 = vcmp.lt.s32.totalorder %v1511, %v780
    %v1514 = vsel %vm1512, 1, 0
    %v1515 = vsel %vm1513, 1, 0
    %1516 = vset.pattern.permute.xlu0 0
    %1517 = vperm.xlu0 %1516, %v1514
    %v1518 = vpop.permute.xlu0 %1517
    %1519 = vset.pattern.permute.xlu0 0
    %1520 = vperm.xlu0 %1519, %v1515
    %v1521 = vpop.permute.xlu0 %1520
    %vm1522 = vcmp.eq.s32.totalorder %v1518, 1
    %vm1523 = vcmp.eq.s32.totalorder %v1521, 1
    %v1524 = vsel %vm1522, %v1508, %v1370
    %v1525 = vsel %vm1523, %v1509, %v1371
    %s1526 = scalar_lea.vmem [#allocation2], 96
    %v1527 = vld [vmem:[%s1526] sm:$0xff]
    %v1528 = vld [vmem:[%s1526 + $0x8] sm:$0xf]
    %v1529 = vld [vmem:[%s1526 + $0xc] sm:$0xff]
    %v1530 = vld [vmem:[%s1526 + $0x14] sm:$0xf]
    %v1531 = vunpack.c.l.bf16 %v1527
    %v1532 = vunpack.c.h.bf16 %v1527
    %v1533 = vunpack.c.l.bf16 %v1528
    %v1534 = vunpack.c.l.bf16 %v1529
    %v1535 = vunpack.c.h.bf16 %v1529
    %v1536 = vunpack.c.l.bf16 %v1530
    %v1537 = vpack.c.bf16 %v1525, %v1524
    %1538 = vmatprep.subr.bf16.mxu0 %v897
    %1539 = vmatpush1.bf16.msra.mxu0 %v896
    %1540 = vmatprep.subr.bf16.mxu0 %v894
    %1541 = vmatpush1.bf16.msra.mxu0 %v893
    %1542 = vmatprep.subr.bf16.mxu0 %v891
    %1543 = vmatpush1.bf16.msra.mxu0 %v890
    %1544 = vmatprep.subr.bf16.mxu0 %v888
    %1545 = vmatpush1.bf16.msra.mxu0 %v887
    %1546 = vmatprep.subr.bf16.mxu0 %v885
    %1547 = vmatpush1.bf16.msra.mxu0 %v884
    %1548 = vmatprep.subr.bf16.mxu0 %v882
    %1549 = vmatpush1.bf16.msra.mxu0 %v881
    %1550 = vmatprep.subr.bf16.mxu0 %v879
    %1551 = vmatpush1.bf16.msra.mxu0 %v878
    %1552 = vmatprep.subr.bf16.mxu0 %v876
    %1553 = vmatpush1.bf16.msra.mxu0 %v875
    %1554 = vmatprep.subr.bf16.mxu0 0
    %1555 = vmatpush2.bf16.msra.mxu0 0
    %1556 = vmatprep.subr.bf16.mxu0 0
    %1557 = vmatpush2.bf16.msra.mxu0 0
    %1558 = vmatprep.subr.bf16.mxu0 0
    %1559 = vmatpush2.bf16.msra.mxu0 0
    %1560 = vmatprep.subr.bf16.mxu0 0
    %1561 = vmatpush2.bf16.msra.mxu0 0
    %1562 = vmatprep.subr.bf16.mxu0 0
    %1563 = vmatpush2.bf16.msra.mxu0 0
    %1564 = vmatprep.subr.bf16.mxu0 0
    %1565 = vmatpush2.bf16.msra.mxu0 0
    %1566 = vmatprep.subr.bf16.mxu0 0
    %1567 = vmatpush2.bf16.msra.mxu0 0
    %1568 = vmatprep.subr.bf16.mxu0 0
    %1569 = vmatpush2.bf16.msra.mxu0 0
    %1570 = vmatprep.mubr.bf16.mxu0 0
    %1571 = vmatmul.mubr.bf16.gmra.mxu0 %v1537
    %v1572 = vpop.f32.mrf.mxu0
    %v1573 = vadd.f32 0.0, %v1572
    %v1574 = vpop.f32.mrf.mxu0
    %v1575 = vadd.f32 0.0, %v1574
    %v1576 = vpop.f32.mrf.mxu0
    %v1577 = vadd.f32 0.0, %v1576
    %v1578 = vpop.f32.mrf.mxu0
    %v1579 = vadd.f32 0.0, %v1578
    %1580 = vdwg.mxu0
    %1581 = vmatprep.subr.bf16.mxu0 0
    %1582 = vmatpush1.bf16.msra.mxu0 %v898
    %1583 = vmatprep.subr.bf16.mxu0 0
    %1584 = vmatpush1.bf16.msra.mxu0 %v895
    %1585 = vmatprep.subr.bf16.mxu0 0
    %1586 = vmatpush1.bf16.msra.mxu0 %v892
    %1587 = vmatprep.subr.bf16.mxu0 0
    %1588 = vmatpush1.bf16.msra.mxu0 %v889
    %1589 = vmatprep.subr.bf16.mxu0 0
    %1590 = vmatpush1.bf16.msra.mxu0 %v886
    %1591 = vmatprep.subr.bf16.mxu0 0
    %1592 = vmatpush1.bf16.msra.mxu0 %v883
    %1593 = vmatprep.subr.bf16.mxu0 0
    %1594 = vmatpush1.bf16.msra.mxu0 %v880
    %1595 = vmatprep.subr.bf16.mxu0 0
    %1596 = vmatpush1.bf16.msra.mxu0 %v877
    %1597 = vmatprep.subr.bf16.mxu0 0
    %1598 = vmatpush2.bf16.msra.mxu0 0
    %1599 = vmatprep.subr.bf16.mxu0 0
    %1600 = vmatpush2.bf16.msra.mxu0 0
    %1601 = vmatprep.subr.bf16.mxu0 0
    %1602 = vmatpush2.bf16.msra.mxu0 0
    %1603 = vmatprep.subr.bf16.mxu0 0
    %1604 = vmatpush2.bf16.msra.mxu0 0
    %1605 = vmatprep.subr.bf16.mxu0 0
    %1606 = vmatpush2.bf16.msra.mxu0 0
    %1607 = vmatprep.subr.bf16.mxu0 0
    %1608 = vmatpush2.bf16.msra.mxu0 0
    %1609 = vmatprep.subr.bf16.mxu0 0
    %1610 = vmatpush2.bf16.msra.mxu0 0
    %1611 = vmatprep.subr.bf16.mxu0 0
    %1612 = vmatpush2.bf16.msra.mxu0 0
    %1613 = vmatprep.mubr.bf16.mxu0 0
    %1614 = vmatmul.mubr.bf16.gmra.mxu0 %v1537
    %v1615 = vpop.f32.mrf.mxu0
    %v1616 = vadd.f32 0.0, %v1615
    %v1617 = vpop.f32.mrf.mxu0
    %v1618 = vpop.f32.mrf.mxu0
    %v1619 = vadd.f32 0.0, %v1618
    %v1620 = vpop.f32.mrf.mxu0
    %1621 = vdwg.mxu0
    %v1622 = vadd.f32 %v1531, %v1573
    %v1623 = vadd.f32 %v1532, %v1575
    %v1624 = vadd.f32 %v1534, %v1577
    %v1625 = vadd.f32 %v1535, %v1579
    %v1626 = vxor.u32 %v1622, 2147483648
    %v1627 = vxor.u32 %v1623, 2147483648
    %v1628 = vxor.u32 %v1624, 2147483648
    %v1629 = vxor.u32 %v1625, 2147483648
    %v1630 = vmul.f32 %v1626, 1.442695
    %v1631 = vpow.pop %v1630
    %v1632 = vmul.f32 %v1627, 1.442695
    %v1633 = vpow.pop %v1632
    %v1634 = vmul.f32 %v1628, 1.442695
    %v1635 = vpow.pop %v1634
    %v1636 = vmul.f32 %v1629, 1.442695
    %v1637 = vpow.pop %v1636
    %v1638 = vadd.f32 %v1631, 1.0
    %v1639 = vadd.f32 %v1633, 1.0
    %v1640 = vadd.f32 %v1635, 1.0
    %v1641 = vadd.f32 %v1637, 1.0
    %v1642 = vrcp.pop %v1638
    %v1643 = vmul.f32 1.0, %v1642
    %v1644 = vrcp.pop %v1639
    %v1645 = vmul.f32 1.0, %v1644
    %v1646 = vrcp.pop %v1640
    %v1647 = vmul.f32 1.0, %v1646
    %v1648 = vrcp.pop %v1641
    %v1649 = vmul.f32 1.0, %v1648
    %v1650 = vadd.f32 %v1616, %v777
    %v1651 = vadd.f32 %v1619, %v777
    %v1652 = vmul.f32 %v1643, %v1650
    %v1653 = vmul.f32 %v1647, %v1651
    %v1654 = vadd.f32 %v1533, %v1652
    %v1655 = vadd.f32 %v1536, %v1653
    %v1656 = vtanh.pop %v1654
    %v1657 = vtanh.pop %v1655
    %v1658 = vsub.f32 %v1524, %v1656
    %v1659 = vsub.f32 %v1525, %v1657
    %v1660 = vmul.f32 %v1645, %v1658
    %v1661 = vmul.f32 %v1649, %v1659
    %v1662 = vadd.f32 %v1656, %v1660
    %v1663 = vadd.f32 %v1657, %v1661
    %s1664 = sadd.s32 %s781, 4
    %v1665 = vstv %s1664
    %vm1666 = vcmp.lt.s32.totalorder %v1665, %v779
    %vm1667 = vcmp.lt.s32.totalorder %v1665, %v780
    %v1668 = vsel %vm1666, 1, 0
    %v1669 = vsel %vm1667, 1, 0
    %1670 = vset.pattern.permute.xlu0 0
    %1671 = vperm.xlu0 %1670, %v1668
    %v1672 = vpop.permute.xlu0 %1671
    %1673 = vset.pattern.permute.xlu0 0
    %1674 = vperm.xlu0 %1673, %v1669
    %v1675 = vpop.permute.xlu0 %1674
    %vm1676 = vcmp.eq.s32.totalorder %v1672, 1
    %vm1677 = vcmp.eq.s32.totalorder %v1675, 1
    %v1678 = vsel %vm1676, %v1662, %v1524
    %v1679 = vsel %vm1677, %v1663, %v1525
    %s1680 = scalar_lea.vmem [#allocation2], 120
    %v1681 = vld [vmem:[%s1680] sm:$0xff]
    %v1682 = vld [vmem:[%s1680 + $0x8] sm:$0xf]
    %v1683 = vld [vmem:[%s1680 + $0xc] sm:$0xff]
    %v1684 = vld [vmem:[%s1680 + $0x14] sm:$0xf]
    %v1685 = vunpack.c.l.bf16 %v1681
    %v1686 = vunpack.c.h.bf16 %v1681
    %v1687 = vunpack.c.l.bf16 %v1682
    %v1688 = vunpack.c.l.bf16 %v1683
    %v1689 = vunpack.c.h.bf16 %v1683
    %v1690 = vunpack.c.l.bf16 %v1684
    %v1691 = vpack.c.bf16 %v1679, %v1678
    %1692 = vmatprep.subr.bf16.mxu0 %v897
    %1693 = vmatpush1.bf16.msra.mxu0 %v896
    %1694 = vmatprep.subr.bf16.mxu0 %v894
    %1695 = vmatpush1.bf16.msra.mxu0 %v893
    %1696 = vmatprep.subr.bf16.mxu0 %v891
    %1697 = vmatpush1.bf16.msra.mxu0 %v890
    %1698 = vmatprep.subr.bf16.mxu0 %v888
    %1699 = vmatpush1.bf16.msra.mxu0 %v887
    %1700 = vmatprep.subr.bf16.mxu0 %v885
    %1701 = vmatpush1.bf16.msra.mxu0 %v884
    %1702 = vmatprep.subr.bf16.mxu0 %v882
    %1703 = vmatpush1.bf16.msra.mxu0 %v881
    %1704 = vmatprep.subr.bf16.mxu0 %v879
    %1705 = vmatpush1.bf16.msra.mxu0 %v878
    %1706 = vmatprep.subr.bf16.mxu0 %v876
    %1707 = vmatpush1.bf16.msra.mxu0 %v875
    %1708 = vmatprep.subr.bf16.mxu0 0
    %1709 = vmatpush2.bf16.msra.mxu0 0
    %1710 = vmatprep.subr.bf16.mxu0 0
    %1711 = vmatpush2.bf16.msra.mxu0 0
    %1712 = vmatprep.subr.bf16.mxu0 0
    %1713 = vmatpush2.bf16.msra.mxu0 0
    %1714 = vmatprep.subr.bf16.mxu0 0
    %1715 = vmatpush2.bf16.msra.mxu0 0
    %1716 = vmatprep.subr.bf16.mxu0 0
    %1717 = vmatpush2.bf16.msra.mxu0 0
    %1718 = vmatprep.subr.bf16.mxu0 0
    %1719 = vmatpush2.bf16.msra.mxu0 0
    %1720 = vmatprep.subr.bf16.mxu0 0
    %1721 = vmatpush2.bf16.msra.mxu0 0
    %1722 = vmatprep.subr.bf16.mxu0 0
    %1723 = vmatpush2.bf16.msra.mxu0 0
    %1724 = vmatprep.mubr.bf16.mxu0 0
    %1725 = vmatmul.mubr.bf16.gmra.mxu0 %v1691
    %v1726 = vpop.f32.mrf.mxu0
    %v1727 = vadd.f32 0.0, %v1726
    %v1728 = vpop.f32.mrf.mxu0
    %v1729 = vadd.f32 0.0, %v1728
    %v1730 = vpop.f32.mrf.mxu0
    %v1731 = vadd.f32 0.0, %v1730
    %v1732 = vpop.f32.mrf.mxu0
    %v1733 = vadd.f32 0.0, %v1732
    %1734 = vdwg.mxu0
    %1735 = vmatprep.subr.bf16.mxu0 0
    %1736 = vmatpush1.bf16.msra.mxu0 %v898
    %1737 = vmatprep.subr.bf16.mxu0 0
    %1738 = vmatpush1.bf16.msra.mxu0 %v895
    %1739 = vmatprep.subr.bf16.mxu0 0
    %1740 = vmatpush1.bf16.msra.mxu0 %v892
    %1741 = vmatprep.subr.bf16.mxu0 0
    %1742 = vmatpush1.bf16.msra.mxu0 %v889
    %1743 = vmatprep.subr.bf16.mxu0 0
    %1744 = vmatpush1.bf16.msra.mxu0 %v886
    %1745 = vmatprep.subr.bf16.mxu0 0
    %1746 = vmatpush1.bf16.msra.mxu0 %v883
    %1747 = vmatprep.subr.bf16.mxu0 0
    %1748 = vmatpush1.bf16.msra.mxu0 %v880
    %1749 = vmatprep.subr.bf16.mxu0 0
    %1750 = vmatpush1.bf16.msra.mxu0 %v877
    %1751 = vmatprep.subr.bf16.mxu0 0
    %1752 = vmatpush2.bf16.msra.mxu0 0
    %1753 = vmatprep.subr.bf16.mxu0 0
    %1754 = vmatpush2.bf16.msra.mxu0 0
    %1755 = vmatprep.subr.bf16.mxu0 0
    %1756 = vmatpush2.bf16.msra.mxu0 0
    %1757 = vmatprep.subr.bf16.mxu0 0
    %1758 = vmatpush2.bf16.msra.mxu0 0
    %1759 = vmatprep.subr.bf16.mxu0 0
    %1760 = vmatpush2.bf16.msra.mxu0 0
    %1761 = vmatprep.subr.bf16.mxu0 0
    %1762 = vmatpush2.bf16.msra.mxu0 0
    %1763 = vmatprep.subr.bf16.mxu0 0
    %1764 = vmatpush2.bf16.msra.mxu0 0
    %1765 = vmatprep.subr.bf16.mxu0 0
    %1766 = vmatpush2.bf16.msra.mxu0 0
    %1767 = vmatprep.mubr.bf16.mxu0 0
    %1768 = vmatmul.mubr.bf16.gmra.mxu0 %v1691
    %v1769 = vpop.f32.mrf.mxu0
    %v1770 = vadd.f32 0.0, %v1769
    %v1771 = vpop.f32.mrf.mxu0
    %v1772 = vpop.f32.mrf.mxu0
    %v1773 = vadd.f32 0.0, %v1772
    %v1774 = vpop.f32.mrf.mxu0
    %1775 = vdwg.mxu0
    %v1776 = vadd.f32 %v1685, %v1727
    %v1777 = vadd.f32 %v1686, %v1729
    %v1778 = vadd.f32 %v1688, %v1731
    %v1779 = vadd.f32 %v1689, %v1733
    %v1780 = vxor.u32 %v1776, 2147483648
    %v1781 = vxor.u32 %v1777, 2147483648
    %v1782 = vxor.u32 %v1778, 2147483648
    %v1783 = vxor.u32 %v1779, 2147483648
    %v1784 = vmul.f32 %v1780, 1.442695
    %v1785 = vpow.pop %v1784
    %v1786 = vmul.f32 %v1781, 1.442695
    %v1787 = vpow.pop %v1786
    %v1788 = vmul.f32 %v1782, 1.442695
    %v1789 = vpow.pop %v1788
    %v1790 = vmul.f32 %v1783, 1.442695
    %v1791 = vpow.pop %v1790
    %v1792 = vadd.f32 %v1785, 1.0
    %v1793 = vadd.f32 %v1787, 1.0
    %v1794 = vadd.f32 %v1789, 1.0
    %v1795 = vadd.f32 %v1791, 1.0
    %v1796 = vrcp.pop %v1792
    %v1797 = vmul.f32 1.0, %v1796
    %v1798 = vrcp.pop %v1793
    %v1799 = vmul.f32 1.0, %v1798
    %v1800 = vrcp.pop %v1794
    %v1801 = vmul.f32 1.0, %v1800
    %v1802 = vrcp.pop %v1795
    %v1803 = vmul.f32 1.0, %v1802
    %v1804 = vadd.f32 %v1770, %v777
    %v1805 = vadd.f32 %v1773, %v777
    %v1806 = vmul.f32 %v1797, %v1804
    %v1807 = vmul.f32 %v1801, %v1805
    %v1808 = vadd.f32 %v1687, %v1806
    %v1809 = vadd.f32 %v1690, %v1807
    %v1810 = vtanh.pop %v1808
    %v1811 = vtanh.pop %v1809
    %v1812 = vsub.f32 %v1678, %v1810
    %v1813 = vsub.f32 %v1679, %v1811
    %v1814 = vmul.f32 %v1799, %v1812
    %v1815 = vmul.f32 %v1803, %v1813
    %v1816 = vadd.f32 %v1810, %v1814
    %v1817 = vadd.f32 %v1811, %v1815
    %s1818 = sadd.s32 %s781, 5
    %v1819 = vstv %s1818
    %vm1820 = vcmp.lt.s32.totalorder %v1819, %v779
    %vm1821 = vcmp.lt.s32.totalorder %v1819, %v780
    %v1822 = vsel %vm1820, 1, 0
    %v1823 = vsel %vm1821, 1, 0
    %1824 = vset.pattern.permute.xlu0 0
    %1825 = vperm.xlu0 %1824, %v1822
    %v1826 = vpop.permute.xlu0 %1825
    %1827 = vset.pattern.permute.xlu0 0
    %1828 = vperm.xlu0 %1827, %v1823
    %v1829 = vpop.permute.xlu0 %1828
    %vm1830 = vcmp.eq.s32.totalorder %v1826, 1
    %vm1831 = vcmp.eq.s32.totalorder %v1829, 1
    %v1832 = vsel %vm1830, %v1816, %v1678
    %v1833 = vsel %vm1831, %v1817, %v1679
    %s1834 = scalar_lea.vmem [#allocation2], 144
    %v1835 = vld [vmem:[%s1834] sm:$0xff]
    %v1836 = vld [vmem:[%s1834 + $0x8] sm:$0xf]
    %v1837 = vld [vmem:[%s1834 + $0xc] sm:$0xff]
    %v1838 = vld [vmem:[%s1834 + $0x14] sm:$0xf]
    %v1839 = vunpack.c.l.bf16 %v1835
    %v1840 = vunpack.c.h.bf16 %v1835
    %v1841 = vunpack.c.l.bf16 %v1836
    %v1842 = vunpack.c.l.bf16 %v1837
    %v1843 = vunpack.c.h.bf16 %v1837
    %v1844 = vunpack.c.l.bf16 %v1838
    %v1845 = vpack.c.bf16 %v1833, %v1832
    %1846 = vmatprep.subr.bf16.mxu0 %v897
    %1847 = vmatpush1.bf16.msra.mxu0 %v896
    %1848 = vmatprep.subr.bf16.mxu0 %v894
    %1849 = vmatpush1.bf16.msra.mxu0 %v893
    %1850 = vmatprep.subr.bf16.mxu0 %v891
    %1851 = vmatpush1.bf16.msra.mxu0 %v890
    %1852 = vmatprep.subr.bf16.mxu0 %v888
    %1853 = vmatpush1.bf16.msra.mxu0 %v887
    %1854 = vmatprep.subr.bf16.mxu0 %v885
    %1855 = vmatpush1.bf16.msra.mxu0 %v884
    %1856 = vmatprep.subr.bf16.mxu0 %v882
    %1857 = vmatpush1.bf16.msra.mxu0 %v881
    %1858 = vmatprep.subr.bf16.mxu0 %v879
    %1859 = vmatpush1.bf16.msra.mxu0 %v878
    %1860 = vmatprep.subr.bf16.mxu0 %v876
    %1861 = vmatpush1.bf16.msra.mxu0 %v875
    %1862 = vmatprep.subr.bf16.mxu0 0
    %1863 = vmatpush2.bf16.msra.mxu0 0
    %1864 = vmatprep.subr.bf16.mxu0 0
    %1865 = vmatpush2.bf16.msra.mxu0 0
    %1866 = vmatprep.subr.bf16.mxu0 0
    %1867 = vmatpush2.bf16.msra.mxu0 0
    %1868 = vmatprep.subr.bf16.mxu0 0
    %1869 = vmatpush2.bf16.msra.mxu0 0
    %1870 = vmatprep.subr.bf16.mxu0 0
    %1871 = vmatpush2.bf16.msra.mxu0 0
    %1872 = vmatprep.subr.bf16.mxu0 0
    %1873 = vmatpush2.bf16.msra.mxu0 0
    %1874 = vmatprep.subr.bf16.mxu0 0
    %1875 = vmatpush2.bf16.msra.mxu0 0
    %1876 = vmatprep.subr.bf16.mxu0 0
    %1877 = vmatpush2.bf16.msra.mxu0 0
    %1878 = vmatprep.mubr.bf16.mxu0 0
    %1879 = vmatmul.mubr.bf16.gmra.mxu0 %v1845
    %v1880 = vpop.f32.mrf.mxu0
    %v1881 = vadd.f32 0.0, %v1880
    %v1882 = vpop.f32.mrf.mxu0
    %v1883 = vadd.f32 0.0, %v1882
    %v1884 = vpop.f32.mrf.mxu0
    %v1885 = vadd.f32 0.0, %v1884
    %v1886 = vpop.f32.mrf.mxu0
    %v1887 = vadd.f32 0.0, %v1886
    %1888 = vdwg.mxu0
    %1889 = vmatprep.subr.bf16.mxu0 0
    %1890 = vmatpush1.bf16.msra.mxu0 %v898
    %1891 = vmatprep.subr.bf16.mxu0 0
    %1892 = vmatpush1.bf16.msra.mxu0 %v895
    %1893 = vmatprep.subr.bf16.mxu0 0
    %1894 = vmatpush1.bf16.msra.mxu0 %v892
    %1895 = vmatprep.subr.bf16.mxu0 0
    %1896 = vmatpush1.bf16.msra.mxu0 %v889
    %1897 = vmatprep.subr.bf16.mxu0 0
    %1898 = vmatpush1.bf16.msra.mxu0 %v886
    %1899 = vmatprep.subr.bf16.mxu0 0
    %1900 = vmatpush1.bf16.msra.mxu0 %v883
    %1901 = vmatprep.subr.bf16.mxu0 0
    %1902 = vmatpush1.bf16.msra.mxu0 %v880
    %1903 = vmatprep.subr.bf16.mxu0 0
    %1904 = vmatpush1.bf16.msra.mxu0 %v877
    %1905 = vmatprep.subr.bf16.mxu0 0
    %1906 = vmatpush2.bf16.msra.mxu0 0
    %1907 = vmatprep.subr.bf16.mxu0 0
    %1908 = vmatpush2.bf16.msra.mxu0 0
    %1909 = vmatprep.subr.bf16.mxu0 0
    %1910 = vmatpush2.bf16.msra.mxu0 0
    %1911 = vmatprep.subr.bf16.mxu0 0
    %1912 = vmatpush2.bf16.msra.mxu0 0
    %1913 = vmatprep.subr.bf16.mxu0 0
    %1914 = vmatpush2.bf16.msra.mxu0 0
    %1915 = vmatprep.subr.bf16.mxu0 0
    %1916 = vmatpush2.bf16.msra.mxu0 0
    %1917 = vmatprep.subr.bf16.mxu0 0
    %1918 = vmatpush2.bf16.msra.mxu0 0
    %1919 = vmatprep.subr.bf16.mxu0 0
    %1920 = vmatpush2.bf16.msra.mxu0 0
    %1921 = vmatprep.mubr.bf16.mxu0 0
    %1922 = vmatmul.mubr.bf16.gmra.mxu0 %v1845
    %v1923 = vpop.f32.mrf.mxu0
    %v1924 = vadd.f32 0.0, %v1923
    %v1925 = vpop.f32.mrf.mxu0
    %v1926 = vpop.f32.mrf.mxu0
    %v1927 = vadd.f32 0.0, %v1926
    %v1928 = vpop.f32.mrf.mxu0
    %1929 = vdwg.mxu0
    %v1930 = vadd.f32 %v1839, %v1881
    %v1931 = vadd.f32 %v1840, %v1883
    %v1932 = vadd.f32 %v1842, %v1885
    %v1933 = vadd.f32 %v1843, %v1887
    %v1934 = vxor.u32 %v1930, 2147483648
    %v1935 = vxor.u32 %v1931, 2147483648
    %v1936 = vxor.u32 %v1932, 2147483648
    %v1937 = vxor.u32 %v1933, 2147483648
    %v1938 = vmul.f32 %v1934, 1.442695
    %v1939 = vpow.pop %v1938
    %v1940 = vmul.f32 %v1935, 1.442695
    %v1941 = vpow.pop %v1940
    %v1942 = vmul.f32 %v1936, 1.442695
    %v1943 = vpow.pop %v1942
    %v1944 = vmul.f32 %v1937, 1.442695
    %v1945 = vpow.pop %v1944
    %v1946 = vadd.f32 %v1939, 1.0
    %v1947 = vadd.f32 %v1941, 1.0
    %v1948 = vadd.f32 %v1943, 1.0
    %v1949 = vadd.f32 %v1945, 1.0
    %v1950 = vrcp.pop %v1946
    %v1951 = vmul.f32 1.0, %v1950
    %v1952 = vrcp.pop %v1947
    %v1953 = vmul.f32 1.0, %v1952
    %v1954 = vrcp.pop %v1948
    %v1955 = vmul.f32 1.0, %v1954
    %v1956 = vrcp.pop %v1949
    %v1957 = vmul.f32 1.0, %v1956
    %v1958 = vadd.f32 %v1924, %v777
    %v1959 = vadd.f32 %v1927, %v777
    %v1960 = vmul.f32 %v1951, %v1958
    %v1961 = vmul.f32 %v1955, %v1959
    %v1962 = vadd.f32 %v1841, %v1960
    %v1963 = vadd.f32 %v1844, %v1961
    %v1964 = vtanh.pop %v1962
    %v1965 = vtanh.pop %v1963
    %v1966 = vsub.f32 %v1832, %v1964
    %v1967 = vsub.f32 %v1833, %v1965
    %v1968 = vmul.f32 %v1953, %v1966
    %v1969 = vmul.f32 %v1957, %v1967
    %v1970 = vadd.f32 %v1964, %v1968
    %v1971 = vadd.f32 %v1965, %v1969
    %s1972 = sadd.s32 %s781, 6
    %v1973 = vstv %s1972
    %vm1974 = vcmp.lt.s32.totalorder %v1973, %v779
    %vm1975 = vcmp.lt.s32.totalorder %v1973, %v780
    %v1976 = vsel %vm1974, 1, 0
    %v1977 = vsel %vm1975, 1, 0
    %1978 = vset.pattern.permute.xlu0 0
    %1979 = vperm.xlu0 %1978, %v1976
    %v1980 = vpop.permute.xlu0 %1979
    %1981 = vset.pattern.permute.xlu0 0
    %1982 = vperm.xlu0 %1981, %v1977
    %v1983 = vpop.permute.xlu0 %1982
    %vm1984 = vcmp.eq.s32.totalorder %v1980, 1
    %vm1985 = vcmp.eq.s32.totalorder %v1983, 1
    %v1986 = vsel %vm1984, %v1970, %v1832
    %v1987 = vsel %vm1985, %v1971, %v1833
    %s1988 = scalar_lea.vmem [#allocation2], 168
    %v1989 = vld [vmem:[%s1988] sm:$0xff]
    %v1990 = vld [vmem:[%s1988 + $0x8] sm:$0xf]
    %v1991 = vld [vmem:[%s1988 + $0xc] sm:$0xff]
    %v1992 = vld [vmem:[%s1988 + $0x14] sm:$0xf]
    %v1993 = vunpack.c.l.bf16 %v1989
    %v1994 = vunpack.c.h.bf16 %v1989
    %v1995 = vunpack.c.l.bf16 %v1990
    %v1996 = vunpack.c.l.bf16 %v1991
    %v1997 = vunpack.c.h.bf16 %v1991
    %v1998 = vunpack.c.l.bf16 %v1992
    %v1999 = vpack.c.bf16 %v1987, %v1986
    %2000 = vmatprep.subr.bf16.mxu0 %v897
    %2001 = vmatpush1.bf16.msra.mxu0 %v896
    %2002 = vmatprep.subr.bf16.mxu0 %v894
    %2003 = vmatpush1.bf16.msra.mxu0 %v893
    %2004 = vmatprep.subr.bf16.mxu0 %v891
    %2005 = vmatpush1.bf16.msra.mxu0 %v890
    %2006 = vmatprep.subr.bf16.mxu0 %v888
    %2007 = vmatpush1.bf16.msra.mxu0 %v887
    %2008 = vmatprep.subr.bf16.mxu0 %v885
    %2009 = vmatpush1.bf16.msra.mxu0 %v884
    %2010 = vmatprep.subr.bf16.mxu0 %v882
    %2011 = vmatpush1.bf16.msra.mxu0 %v881
    %2012 = vmatprep.subr.bf16.mxu0 %v879
    %2013 = vmatpush1.bf16.msra.mxu0 %v878
    %2014 = vmatprep.subr.bf16.mxu0 %v876
    %2015 = vmatpush1.bf16.msra.mxu0 %v875
    %2016 = vmatprep.subr.bf16.mxu0 0
    %2017 = vmatpush2.bf16.msra.mxu0 0
    %2018 = vmatprep.subr.bf16.mxu0 0
    %2019 = vmatpush2.bf16.msra.mxu0 0
    %2020 = vmatprep.subr.bf16.mxu0 0
    %2021 = vmatpush2.bf16.msra.mxu0 0
    %2022 = vmatprep.subr.bf16.mxu0 0
    %2023 = vmatpush2.bf16.msra.mxu0 0
    %2024 = vmatprep.subr.bf16.mxu0 0
    %2025 = vmatpush2.bf16.msra.mxu0 0
    %2026 = vmatprep.subr.bf16.mxu0 0
    %2027 = vmatpush2.bf16.msra.mxu0 0
    %2028 = vmatprep.subr.bf16.mxu0 0
    %2029 = vmatpush2.bf16.msra.mxu0 0
    %2030 = vmatprep.subr.bf16.mxu0 0
    %2031 = vmatpush2.bf16.msra.mxu0 0
    %2032 = vmatprep.mubr.bf16.mxu0 0
    %2033 = vmatmul.mubr.bf16.gmra.mxu0 %v1999
    %v2034 = vpop.f32.mrf.mxu0
    %v2035 = vadd.f32 0.0, %v2034
    %v2036 = vpop.f32.mrf.mxu0
    %v2037 = vadd.f32 0.0, %v2036
    %v2038 = vpop.f32.mrf.mxu0
    %v2039 = vadd.f32 0.0, %v2038
    %v2040 = vpop.f32.mrf.mxu0
    %v2041 = vadd.f32 0.0, %v2040
    %2042 = vdwg.mxu0
    %2043 = vmatprep.subr.bf16.mxu0 0
    %2044 = vmatpush1.bf16.msra.mxu0 %v898
    %2045 = vmatprep.subr.bf16.mxu0 0
    %2046 = vmatpush1.bf16.msra.mxu0 %v895
    %2047 = vmatprep.subr.bf16.mxu0 0
    %2048 = vmatpush1.bf16.msra.mxu0 %v892
    %2049 = vmatprep.subr.bf16.mxu0 0
    %2050 = vmatpush1.bf16.msra.mxu0 %v889
    %2051 = vmatprep.subr.bf16.mxu0 0
    %2052 = vmatpush1.bf16.msra.mxu0 %v886
    %2053 = vmatprep.subr.bf16.mxu0 0
    %2054 = vmatpush1.bf16.msra.mxu0 %v883
    %2055 = vmatprep.subr.bf16.mxu0 0
    %2056 = vmatpush1.bf16.msra.mxu0 %v880
    %2057 = vmatprep.subr.bf16.mxu0 0
    %2058 = vmatpush1.bf16.msra.mxu0 %v877
    %2059 = vmatprep.subr.bf16.mxu0 0
    %2060 = vmatpush2.bf16.msra.mxu0 0
    %2061 = vmatprep.subr.bf16.mxu0 0
    %2062 = vmatpush2.bf16.msra.mxu0 0
    %2063 = vmatprep.subr.bf16.mxu0 0
    %2064 = vmatpush2.bf16.msra.mxu0 0
    %2065 = vmatprep.subr.bf16.mxu0 0
    %2066 = vmatpush2.bf16.msra.mxu0 0
    %2067 = vmatprep.subr.bf16.mxu0 0
    %2068 = vmatpush2.bf16.msra.mxu0 0
    %2069 = vmatprep.subr.bf16.mxu0 0
    %2070 = vmatpush2.bf16.msra.mxu0 0
    %2071 = vmatprep.subr.bf16.mxu0 0
    %2072 = vmatpush2.bf16.msra.mxu0 0
    %2073 = vmatprep.subr.bf16.mxu0 0
    %2074 = vmatpush2.bf16.msra.mxu0 0
    %2075 = vmatprep.mubr.bf16.mxu0 0
    %2076 = vmatmul.mubr.bf16.gmra.mxu0 %v1999
    %v2077 = vpop.f32.mrf.mxu0
    %v2078 = vadd.f32 0.0, %v2077
    %v2079 = vpop.f32.mrf.mxu0
    %v2080 = vpop.f32.mrf.mxu0
    %v2081 = vadd.f32 0.0, %v2080
    %v2082 = vpop.f32.mrf.mxu0
    %2083 = vdwg.mxu0
    %v2084 = vadd.f32 %v1993, %v2035
    %v2085 = vadd.f32 %v1994, %v2037
    %v2086 = vadd.f32 %v1996, %v2039
    %v2087 = vadd.f32 %v1997, %v2041
    %v2088 = vxor.u32 %v2084, 2147483648
    %v2089 = vxor.u32 %v2085, 2147483648
    %v2090 = vxor.u32 %v2086, 2147483648
    %v2091 = vxor.u32 %v2087, 2147483648
    %v2092 = vmul.f32 %v2088, 1.442695
    %v2093 = vpow.pop %v2092
    %v2094 = vmul.f32 %v2089, 1.442695
    %v2095 = vpow.pop %v2094
    %v2096 = vmul.f32 %v2090, 1.442695
    %v2097 = vpow.pop %v2096
    %v2098 = vmul.f32 %v2091, 1.442695
    %v2099 = vpow.pop %v2098
    %v2100 = vadd.f32 %v2093, 1.0
    %v2101 = vadd.f32 %v2095, 1.0
    %v2102 = vadd.f32 %v2097, 1.0
    %v2103 = vadd.f32 %v2099, 1.0
    %v2104 = vrcp.pop %v2100
    %v2105 = vmul.f32 1.0, %v2104
    %v2106 = vrcp.pop %v2101
    %v2107 = vmul.f32 1.0, %v2106
    %v2108 = vrcp.pop %v2102
    %v2109 = vmul.f32 1.0, %v2108
    %v2110 = vrcp.pop %v2103
    %v2111 = vmul.f32 1.0, %v2110
    %v2112 = vadd.f32 %v2078, %v777
    %v2113 = vadd.f32 %v2081, %v777
    %v2114 = vmul.f32 %v2105, %v2112
    %v2115 = vmul.f32 %v2109, %v2113
    %v2116 = vadd.f32 %v1995, %v2114
    %v2117 = vadd.f32 %v1998, %v2115
    %v2118 = vtanh.pop %v2116
    %v2119 = vtanh.pop %v2117
    %v2120 = vsub.f32 %v1986, %v2118
    %v2121 = vsub.f32 %v1987, %v2119
    %v2122 = vmul.f32 %v2107, %v2120
    %v2123 = vmul.f32 %v2111, %v2121
    %v2124 = vadd.f32 %v2118, %v2122
    %v2125 = vadd.f32 %v2119, %v2123
    %s2126 = sadd.s32 %s781, 7
    %v2127 = vstv %s2126
    %vm2128 = vcmp.lt.s32.totalorder %v2127, %v779
    %vm2129 = vcmp.lt.s32.totalorder %v2127, %v780
    %v2130 = vsel %vm2128, 1, 0
    %v2131 = vsel %vm2129, 1, 0
    %2132 = vset.pattern.permute.xlu0 0
    %2133 = vperm.xlu0 %2132, %v2130
    %v2134 = vpop.permute.xlu0 %2133
    %2135 = vset.pattern.permute.xlu0 0
    %2136 = vperm.xlu0 %2135, %v2131
    %v2137 = vpop.permute.xlu0 %2136
    %vm2138 = vcmp.eq.s32.totalorder %v2134, 1
    %vm2139 = vcmp.eq.s32.totalorder %v2137, 1
    %v2140 = vsel %vm2138, %v2124, %v1986
    %v2141 = vsel %vm2139, %v2125, %v1987
    %2142 = vst [vmem:[#allocation3] sm:$0xff] %v2140
    %2143 = vst [vmem:[#allocation3 + $0x8] sm:$0xff] %v2141
    // Predicated region
    $region58: #{tpu_custom_call.1} parent=1 // pred_check
      %p2144 = pneg %p89
    $region59: #{tpu_custom_call.1} parent=1 // pred_check_branch
      %2146 = sbr.rel (%p2144) target = $region61
    $region60: #{tpu_custom_call.1} parent=1 // pred_region
      %v2147 = vpack.c.bf16 %v2141, %v2140
      %v2148 = vld [vmem:[#allocation10] sm:$0xf]
      %v2149 = vld [vmem:[#allocation10 + $0x4] sm:$0xf]
      %v2150 = vld [vmem:[#allocation10 + $0x8] sm:$0xf]
      %v2151 = vld [vmem:[#allocation10 + $0xc] sm:$0xf]
      %v2152 = vld [vmem:[#allocation10 + $0x10] sm:$0xf]
      %v2153 = vld [vmem:[#allocation10 + $0x14] sm:$0xf]
      %v2154 = vld [vmem:[#allocation10 + $0x18] sm:$0xf]
      %v2155 = vld [vmem:[#allocation10 + $0x1c] sm:$0xf]
      %v2156 = vld [vmem:[#allocation10 + $0x20] sm:$0xf]
      %v2157 = vld [vmem:[#allocation10 + $0x24] sm:$0xf]
      %v2158 = vld [vmem:[#allocation10 + $0x28] sm:$0xf]
      %v2159 = vld [vmem:[#allocation10 + $0x2c] sm:$0xf]
      %v2160 = vld [vmem:[#allocation10 + $0x30] sm:$0xf]
      %v2161 = vld [vmem:[#allocation10 + $0x34] sm:$0xf]
      %v2162 = vld [vmem:[#allocation10 + $0x38] sm:$0xf]
      %v2163 = vld [vmem:[#allocation10 + $0x3c] sm:$0xf]
      %v2164 = vld [vmem:[%s8] sm:$0x1]
      %v2166 = vlaneseq
      %v2167 = vshrl.u32 %v2166, 7
      %v2168 = vsub.s32 0, %v2167
      %v2169 = vrot.slane %v2164, %v2168
      %v2187 = vunpack.c.l.b16 %v2148
      %v2188 = vunpack.c.l.b16 %v2149
      %v2189 = vunpack.c.l.b16 %v2150
      %v2190 = vunpack.c.l.b16 %v2151
      %v2191 = vunpack.c.l.b16 %v2152
      %v2192 = vunpack.c.l.b16 %v2153
      %v2193 = vunpack.c.l.b16 %v2154
      %v2194 = vunpack.c.l.b16 %v2155
      %v2195 = vunpack.c.l.b16 %v2156
      %v2196 = vunpack.c.l.b16 %v2157
      %v2197 = vunpack.c.l.b16 %v2158
      %v2198 = vunpack.c.l.b16 %v2159
      %v2199 = vunpack.c.l.b16 %v2160
      %v2200 = vunpack.c.l.b16 %v2161
      %v2201 = vunpack.c.l.b16 %v2162
      %v2202 = vunpack.c.l.b16 %v2163
      %v2203 = vpack.c.b16 %v2188, %v2187
      %v2204 = vpack.c.b16 %v2190, %v2189
      %v2205 = vpack.c.b16 %v2192, %v2191
      %v2206 = vpack.c.b16 %v2194, %v2193
      %v2207 = vpack.c.b16 %v2196, %v2195
      %v2208 = vpack.c.b16 %v2198, %v2197
      %v2209 = vpack.c.b16 %v2200, %v2199
      %v2210 = vpack.c.b16 %v2202, %v2201
      %2219 = vmatprep.subr.bf16.mxu0 0
      %2220 = vmatpush1.bf16.msra.mxu0 %v2210
      %2221 = vmatprep.subr.bf16.mxu0 0
      %2222 = vmatpush1.bf16.msra.mxu0 %v2209
      %2223 = vmatprep.subr.bf16.mxu0 0
      %2224 = vmatpush1.bf16.msra.mxu0 %v2208
      %2225 = vmatprep.subr.bf16.mxu0 0
      %2226 = vmatpush1.bf16.msra.mxu0 %v2207
      %2227 = vmatprep.subr.bf16.mxu0 0
      %2228 = vmatpush1.bf16.msra.mxu0 %v2206
      %2229 = vmatprep.subr.bf16.mxu0 0
      %2230 = vmatpush1.bf16.msra.mxu0 %v2205
      %2231 = vmatprep.subr.bf16.mxu0 0
      %2232 = vmatpush1.bf16.msra.mxu0 %v2204
      %2233 = vmatprep.subr.bf16.mxu0 0
      %2234 = vmatpush1.bf16.msra.mxu0 %v2203
      %2235 = vmatprep.subr.bf16.mxu0 0
      %2236 = vmatpush2.bf16.msra.mxu0 0
      %2237 = vmatprep.subr.bf16.mxu0 0
      %2238 = vmatpush2.bf16.msra.mxu0 0
      %2239 = vmatprep.subr.bf16.mxu0 0
      %2240 = vmatpush2.bf16.msra.mxu0 0
      %2241 = vmatprep.subr.bf16.mxu0 0
      %2242 = vmatpush2.bf16.msra.mxu0 0
      %2243 = vmatprep.subr.bf16.mxu0 0
      %2244 = vmatpush2.bf16.msra.mxu0 0
      %2245 = vmatprep.subr.bf16.mxu0 0
      %2246 = vmatpush2.bf16.msra.mxu0 0
      %2247 = vmatprep.subr.bf16.mxu0 0
      %2248 = vmatpush2.bf16.msra.mxu0 0
      %2249 = vmatprep.subr.bf16.mxu0 0
      %2250 = vmatpush2.bf16.msra.mxu0 0
      %2251 = vmatprep.mubr.bf16.mxu0 0
      %2252 = vmatmul.mubr.bf16.gmra.mxu0 %v2147
      %v2253 = vpop.f32.mrf.mxu0
      %v2254 = vadd.f32 %v2169, %v2253
      %v2255 = vpop.f32.mrf.mxu0
      %v2256 = vpop.f32.mrf.mxu0
      %v2257 = vadd.f32 %v2169, %v2256
      %v2258 = vpop.f32.mrf.mxu0
      %2259 = vdwg.mxu0
      %2260 = vst [vmem:[#allocation12] sm:$0xff] %v2254
      %2261 = vst [vmem:[#allocation12 + $0x8] sm:$0xff] %v2257
    $region61: #{tpu_custom_call.1} parent=1 // pred_fallthru
      _
    // Predicated region
    $region62: #{tpu_custom_call.1} parent=1 // pred_check
      _
    $region63: #{tpu_custom_call.1} parent=1 // pred_check_branch
      %2263 = sbr.rel (0) target = $region65
    $region64: #{tpu_custom_call.1} parent=1 // pred_region
      %s2265 = ssub.s32 256, 256
      %2266 = vsyncadd [#allocation6], %s2265
      %s2267 = sshll.u32 [#allocation12], 4
      %s2268 = int_to_ptr.vmem [resolvable:$true] %s2267
      %2273 = dma.vmem_to_hbm [thread:$0]  %s2268, 256, %s9, [#allocation6], 128, 128, 8
    $region65: #{tpu_custom_call.1} parent=1 // pred_fallthru
      _
    // Predicated region
    $region66: #{tpu_custom_call.1} parent=1 // pred_check
      _
    $region67: #{tpu_custom_call.1} parent=1 // pred_check_branch
      %2275 = sbr.rel (0) target = $region69
    $region68: #{tpu_custom_call.1} parent=1 // pred_region
      %2276 = dma.done [#allocation6], 256
    $region69: #{tpu_custom_call.1} parent=1 // pred_fallthru
      _
    %2277 = vsyncpa [#allocation5], 1
    %2278 = vsyncpa [#allocation8], 1
    %2279 = vsyncpa [#allocation11], 1
    %2280 = vsyncpa [#allocation6], 1

</llo_original>
